<compile_context>
chip_gen: v7x
topology: tpu7x:2x2x1
jax: 0.10.0
libtpu: 0.0.40
codegen_flags: <defaults>
</compile_context>

<pallas_src>
import numpy as np
import jax
import jax.numpy as jnp
from jax.experimental import pallas as pl
from jax.experimental.pallas import tpu as pltpu


def embolism_kernel(
    tmax_ref,     # SMEM (1,) int32      T_max = max(lengths) (softmax window)
    x_ref,        # (1, T*Bb, D_ts) bf16 batch-block-major, row = t*Bb + j
    len_ref,      # (Bb, 1) int32        per-row sequence lengths
    w_ih_ref,     # (D_ts, 4H) bf16      LSTM input weights  (cols: i,f,o,g)
    w_hh_ref,     # (H, 4H)    bf16      LSTM hidden weights (cols: i,f,o,g)
    b_ref,        # (1, 4H)    f32       b_ih + b_hh         (cols: i,f,o,g)
    attn_w_ref,   # (1, H)     f32       attention Linear(H, 1) weight
    attn_b_ref,   # (1, 1)     f32       attention bias
    static_ref,   # (Bb, D_st) f32
    w_st_ref,     # (D_st, H)  f32
    b_st_ref,     # (1, H)     f32
    w_fu_ref,     # (2H, H)    f32
    b_fu_ref,     # (1, H)     f32
    w_out_ref,    # (1, H)     f32       output Linear(H, 1) weight (row form)
    b_out_ref,    # (1, 1)     f32
    logits_ref,   # (1, 1, Bb) f32       lane-dense output block
    gates_ref,    # (T*Bb, 4H) f32       VMEM scratch: x @ W_ih + b
):
    _, TB, _ = x_ref.shape
    Bb = len_ref.shape[0]
    T = TB // Bb
    H = w_hh_ref.shape[0]
    H3 = 3 * H

    # ---- hoisted input projection: one MXU matmul for all timesteps --------
    gates_ref[...] = (
        jnp.dot(x_ref[0], w_ih_ref[...], preferred_element_type=jnp.float32)
        + b_ref[...]
    )

    w_hh = w_hh_ref[...]          # bf16, held across the loop
    attn_w = attn_w_ref[...]      # (1, H)
    attn_b = attn_b_ref[...]      # (1, 1)
    len_col = len_ref[...]        # (Bb, 1) int32
    tmax = tmax_ref[0]            # scalar int32

    # ---------------- LSTM + online attention over time ---------------------
    # Gate columns were permuted in the wrapper to [i, f, o, g] so a single
    # sigmoid covers the contiguous i/f/o block and a single tanh covers g.
    def step(t, carry):
        h, c, l, acc = carry
        row = pl.multiple_of(t * Bb, Bb)
        gates = gates_ref[pl.ds(row, Bb), :] + jnp.dot(
            h.astype(jnp.bfloat16), w_hh, preferred_element_type=jnp.float32
        )                                                       # (Bb, 4H) f32
        sig = jax.nn.sigmoid(gates[:, :H3])                     # i, f, o
        i_g = sig[:, :H]
        f_g = sig[:, H:2 * H]
        o_g = sig[:, 2 * H:H3]
        g_g = jnp.tanh(gates[:, H3:])                           # g
        c_new = f_g * c + i_g * g_g
        h_new = o_g * jnp.tanh(c_new)
        # pad_packed_sequence zero-pads outputs past each sequence's length.
        mask_t = (len_col > t).astype(jnp.float32)              # (Bb, 1)
        out_t = h_new * mask_t                                  # (Bb, H)
        # Online softmax over time: scores are tanh-bounded (|s| <= 1) so the
        # unshifted exp is exact; only positions t < max(lengths) participate.
        s_t = jnp.tanh(jnp.sum(out_t * attn_w, axis=1, keepdims=True) + attn_b)
        e_t = jnp.exp(s_t) * (t < tmax).astype(jnp.float32)     # (Bb, 1)
        return h_new, c_new, l + e_t, acc + e_t * out_t

    def zeros(n):
        return jnp.zeros((Bb, n), jnp.float32)

    _, _, l, acc = jax.lax.fori_loop(
        0, T, step, (zeros(H), zeros(H), zeros(1), zeros(H)),
        unroll=min(8, T))

    context = acc * (1.0 / l)                                   # (Bb, H)

    # ---------------- static encoder: Linear + ReLU --------------------------
    static_emb = jnp.maximum(
        jnp.dot(static_ref[...], w_st_ref[...], preferred_element_type=jnp.float32)
        + b_st_ref[...],
        0.0,
    )                                                           # (Bb, H)

    # ---------------- fusion: concat([ts, static]) -> Linear + ReLU ----------
    # concat avoided by splitting W_fusion into its two halves.
    w_fu = w_fu_ref[...]
    fused = jnp.maximum(
        jnp.dot(context, w_fu[:H, :], preferred_element_type=jnp.float32)
        + jnp.dot(static_emb, w_fu[H:, :], preferred_element_type=jnp.float32)
        + b_fu_ref[...],
        0.0,
    )                                                           # (Bb, H)

    # ---------------- output layer (lane-dense row) ---------------------------
    # (1, H) x (Bb, H) contracted on H -> (1, Bb); no in-kernel transpose.
    row = jax.lax.dot_general(
        w_out_ref[...], fused, (((1,), (1,)), ((), ())),
        preferred_element_type=jnp.float32) + b_out_ref[...]    # (1, Bb)
    logits_ref[0] = row


def init_params(key, ts_input_dim, static_input_dim, hidden_dim):
    """Deterministic synthetic parameters, shapes match the PyTorch module."""
    H = hidden_dim
    ks = jax.random.split(key, 12)
    u = lambda k, shape, fan_in: jax.random.uniform(
        k, shape, jnp.float32, -1.0 / np.sqrt(fan_in), 1.0 / np.sqrt(fan_in)
    )
    return {
        # LSTM (PyTorch weight_ih: (4H, D), weight_hh: (4H, H)); stored transposed,
        # PyTorch column order [i, f, g, o].
        "w_ih": u(ks[0], (ts_input_dim, 4 * H), H),
        "w_hh": u(ks[1], (H, 4 * H), H),
        "b_lstm": u(ks[2], (1, 4 * H), H) + u(ks[3], (1, 4 * H), H),  # b_ih + b_hh
        # attention Linear(H, 1)
        "attn_w": u(ks[4], (1, H), H),
        "attn_b": u(ks[5], (1, 1), H),
        # static encoder Linear(D_st, H)
        "w_st": u(ks[6], (static_input_dim, H), static_input_dim),
        "b_st": u(ks[7], (1, H), static_input_dim),
        # fusion Linear(2H, H)
        "w_fu": u(ks[8], (2 * H, H), 2 * H),
        "b_fu": u(ks[9], (1, H), 2 * H),
        # output Linear(H, 1): PyTorch weight shape (1, H)
        "w_out": u(ks[10], (1, H), H),
        "b_out": u(ks[11], (1, 1), H),
    }


def _rup(n, m):
    return -(-n // m) * m


def embolism_forward(params, ts_data, ts_lengths, static_data, *, b_blk=128):
    """JAX wrapper: layout glue + one gridded Pallas kernel call (jit-able)."""
    B, T, D_ts = ts_data.shape
    D_st = static_data.shape[1]
    H = params["w_hh"].shape[0]
    H4 = 4 * H

    # ---- batch blocking: multiple of 8, no bigger than needed; prefer >= 2
    # blocks (v7x has two TensorCores) when the batch allows it. --------------
    b_blk = min(b_blk, _rup(B, 8))
    if B > 8 and -(-B // b_blk) < 2:
        b_blk = max(8, _rup(-(-B // 2), 8))
    nb = -(-B // b_blk)
    B_pad = nb * b_blk
    pad_b = B_pad - B

    # ---- gate-column permutation: PyTorch [i,f,g,o] -> kernel [i,f,o,g] -----
    def reorder(w):
        return jnp.concatenate(
            [w[..., :2 * H], w[..., 3 * H:], w[..., 2 * H:3 * H]], axis=-1)

    w_ih = reorder(params["w_ih"]).astype(jnp.bfloat16)
    w_hh = reorder(params["w_hh"]).astype(jnp.bfloat16)
    b_lstm = reorder(params["b_lstm"]).astype(jnp.float32)

    lengths = jnp.asarray(ts_lengths, jnp.int32)
    ts = ts_data.astype(jnp.bfloat16)            # LSTM matmuls consume bf16
    st = static_data.astype(jnp.float32)
    if pad_b:
        ts = jnp.pad(ts, ((0, pad_b), (0, 0), (0, 0)))
        st = jnp.pad(st, ((0, pad_b), (0, 0)))
        lengths = jnp.pad(lengths, (0, pad_b))   # padded rows: length 0

    # batch-block-major, time-major: x_blk[i, t*b_blk + j, :] = ts[i*b_blk + j, t, :]
    x_blk = (ts.reshape(nb, b_blk, T, D_ts)
               .transpose(0, 2, 1, 3)
               .reshape(nb, T * b_blk, D_ts))
    len_col = lengths.reshape(B_pad, 1)
    # softmax window == pad_packed_sequence's max(lengths); device-side scalar,
    # T stays static -> no host sync, no per-length recompile.
    tmax = jnp.max(lengths).reshape(1).astype(jnp.int32)

    rep = lambda shape: pl.BlockSpec(shape, lambda i, tm: (0,) * len(shape))

    grid_spec = pltpu.PrefetchScalarGridSpec(
        num_scalar_prefetch=1,                       # tmax -> SMEM scalar
        grid=(nb,),
        in_specs=[
            pl.BlockSpec((1, T * b_blk, D_ts), lambda i, tm: (i, 0, 0)),  # x
            pl.BlockSpec((b_blk, 1), lambda i, tm: (i, 0)),               # lengths
            rep((D_ts, H4)),                                              # w_ih
            rep((H, H4)),                                                 # w_hh
            rep((1, H4)),                                                 # b_lstm
            rep((1, H)),                                                  # attn_w
            rep((1, 1)),                                                  # attn_b
            pl.BlockSpec((b_blk, D_st), lambda i, tm: (i, 0)),            # static
            rep((D_st, H)),                                               # w_st
            rep((1, H)),                                                  # b_st
            rep((2 * H, H)),                                              # w_fu
            rep((1, H)),                                                  # b_fu
            rep((1, H)),                                                  # w_out
            rep((1, 1)),                                                  # b_out
        ],
        out_specs=pl.BlockSpec((1, 1, b_blk), lambda i, tm: (i, 0, 0)),
        scratch_shapes=[pltpu.VMEM((T * b_blk, H4), jnp.float32)],
    )

    # ---- explicit VMEM budget (lane/sublane padded, inputs double-buffered) --
    def _pad_bytes(shape, itemsize):
        s = list(shape)
        if len(s) == 1:
            s = [1] + s
        s[-1] = _rup(s[-1], 128)
        s[-2] = _rup(s[-2], 8)
        n = itemsize
        for d in s:
            n *= d
        return n

    tiles = [
        ((1, T * b_blk, D_ts), 2), ((b_blk, 1), 4),
        ((D_ts, H4), 2), ((H, H4), 2), ((1, H4), 4),
        ((1, H), 4), ((1, 1), 4),
        ((b_blk, D_st), 4), ((D_st, H), 4), ((1, H), 4),
        ((2 * H, H), 4), ((1, H), 4),
        ((1, H), 4), ((1, 1), 4),
        ((1, 1, b_blk), 4),
    ]
    vmem_est = sum(2 * _pad_bytes(s, b) for s, b in tiles)
    vmem_est += _pad_bytes((T * b_blk, H4), 4)       # gates scratch
    vmem_limit = int(min(max(32 << 20, vmem_est + (4 << 20)), 128 << 20))

    out = pl.pallas_call(
        embolism_kernel,
        out_shape=jax.ShapeDtypeStruct((nb, 1, b_blk), jnp.float32),
        grid_spec=grid_spec,
        compiler_params=pltpu.CompilerParams(
            dimension_semantics=("parallel",),       # shard batch blocks (v7x: 2 TCs)
            vmem_limit_bytes=vmem_limit),
    )(
        tmax, x_blk, len_col,
        w_ih, w_hh, b_lstm,
        params["attn_w"], params["attn_b"],
        st, params["w_st"], params["b_st"],
        params["w_fu"], params["b_fu"],
        params["w_out"], params["b_out"],
    )
    return out.reshape(B_pad)[:B].reshape(B, 1)


if __name__ == "__main__":
    B = 2
    T = 8
    TS_DIM = 6
    STATIC_DIM = 5
    HIDDEN = 32

    key = jax.random.PRNGKey(0)
    k_params, k_ts, k_static = jax.random.split(key, 3)

    params = init_params(k_params, TS_DIM, STATIC_DIM, HIDDEN)

    ts_data = jax.random.normal(k_ts, (B, T, TS_DIM), jnp.float32)
    static_data = jax.random.normal(k_static, (B, STATIC_DIM), jnp.float32)
    ts_lengths = jnp.array([8, 5], dtype=jnp.int32)   # variable-length sequences

    fwd = jax.jit(embolism_forward, static_argnames=("b_blk",))
    logits = fwd(params, ts_data, ts_lengths, static_data)
    jax.block_until_ready(logits)
    assert logits.shape == (B, 1)
    print("KERNEL_OK")
</pallas_src>

<mosaic_0001>
module attributes {stable_mosaic.version = 11 : i64} {
  func.func @embolism_kernel(%arg0: i32, %arg1: memref<1xi32, #tpu.memory_space<smem>>, %arg2: memref<1x64x6xbf16, #tpu.memory_space<vmem>>, %arg3: memref<8x1xi32, #tpu.memory_space<vmem>>, %arg4: memref<6x128xbf16, #tpu.memory_space<vmem>>, %arg5: memref<32x128xbf16, #tpu.memory_space<vmem>>, %arg6: memref<1x128xf32, #tpu.memory_space<vmem>>, %arg7: memref<1x32xf32, #tpu.memory_space<vmem>>, %arg8: memref<1x1xf32, #tpu.memory_space<vmem>>, %arg9: memref<8x5xf32, #tpu.memory_space<vmem>>, %arg10: memref<5x32xf32, #tpu.memory_space<vmem>>, %arg11: memref<1x32xf32, #tpu.memory_space<vmem>>, %arg12: memref<64x32xf32, #tpu.memory_space<vmem>>, %arg13: memref<1x32xf32, #tpu.memory_space<vmem>>, %arg14: memref<1x32xf32, #tpu.memory_space<vmem>>, %arg15: memref<1x1xf32, #tpu.memory_space<vmem>>, %arg16: memref<1x1x8xf32, #tpu.memory_space<vmem>>, %arg17: memref<64x128xf32, #tpu.memory_space<vmem>>) attributes {dimension_semantics = [#tpu.dimension_semantics<parallel>], iteration_bounds = array<i64: 1>, scalar_prefetch = 1 : i64, scratch_operands = 1 : i64, tpu.core_type = #tpu.core_type<tc>, window_params = [{transform_indices = @transform_0, window_bounds = array<i64: 1, 64, 6>}, {transform_indices = @transform_1, window_bounds = array<i64: 8, 1>}, {pipeline_mode = #tpu.pipeline_mode<synchronous>, transform_indices = @transform_2, window_bounds = array<i64: 6, 128>}, {pipeline_mode = #tpu.pipeline_mode<synchronous>, transform_indices = @transform_3, window_bounds = array<i64: 32, 128>}, {pipeline_mode = #tpu.pipeline_mode<synchronous>, transform_indices = @transform_4, window_bounds = array<i64: 1, 128>}, {pipeline_mode = #tpu.pipeline_mode<synchronous>, transform_indices = @transform_5, window_bounds = array<i64: 1, 32>}, {pipeline_mode = #tpu.pipeline_mode<synchronous>, transform_indices = @transform_6, window_bounds = array<i64: 1, 1>}, {transform_indices = @transform_7, window_bounds = array<i64: 8, 5>}, {pipeline_mode = #tpu.pipeline_mode<synchronous>, transform_indices = @transform_8, window_bounds = array<i64: 5, 32>}, {pipeline_mode = #tpu.pipeline_mode<synchronous>, transform_indices = @transform_9, window_bounds = array<i64: 1, 32>}, {pipeline_mode = #tpu.pipeline_mode<synchronous>, transform_indices = @transform_10, window_bounds = array<i64: 64, 32>}, {pipeline_mode = #tpu.pipeline_mode<synchronous>, transform_indices = @transform_11, window_bounds = array<i64: 1, 32>}, {pipeline_mode = #tpu.pipeline_mode<synchronous>, transform_indices = @transform_12, window_bounds = array<i64: 1, 32>}, {pipeline_mode = #tpu.pipeline_mode<synchronous>, transform_indices = @transform_13, window_bounds = array<i64: 1, 1>}, {transform_indices = @transform_14, window_bounds = array<i64: 1, 1, 8>}]} {
    %c0 = arith.constant 0 : index
    %c0_0 = arith.constant 0 : index
    %c0_1 = arith.constant 0 : index
    %0 = vector.load %arg2[%c0, %c0_0, %c0_1] : memref<1x64x6xbf16, #tpu.memory_space<vmem>>, vector<1x64x6xbf16>
    %1 = vector.shape_cast %0 : vector<1x64x6xbf16> to vector<64x6xbf16>
    %c0_2 = arith.constant 0 : index
    %c0_3 = arith.constant 0 : index
    %2 = vector.load %arg4[%c0_2, %c0_3] : memref<6x128xbf16, #tpu.memory_space<vmem>>, vector<6x128xbf16>
    %cst = arith.constant dense<0.000000e+00> : vector<64x128xf32>
    %3 = tpu.matmul %1, %2, %cst {dimension_numbers = #tpu.dot_dimension_numbers<[1], [0], [0], [1], [0, 0, 1, 1], [], []>} : vector<64x6xbf16>, vector<6x128xbf16>, vector<64x128xf32> -> vector<64x128xf32>
    %c0_4 = arith.constant 0 : index
    %c0_5 = arith.constant 0 : index
    %4 = vector.load %arg6[%c0_4, %c0_5] : memref<1x128xf32, #tpu.memory_space<vmem>>, vector<1x128xf32>
    %5 = vector.broadcast %4 : vector<1x128xf32> to vector<64x128xf32>
    %6 = arith.addf %3, %5 : vector<64x128xf32>
    %c0_6 = arith.constant 0 : index
    %c0_7 = arith.constant 0 : index
    %7 = vector.load %arg17[%c0_6, %c0_7] : memref<64x128xf32, #tpu.memory_space<vmem>>, vector<64x128xf32>
    tpu.vector_store %arg17[%c0_6, %c0_7], %6 {strides = array<i32>} : memref<64x128xf32, #tpu.memory_space<vmem>>, vector<64x128xf32>,
    %c0_8 = arith.constant 0 : index
    %c0_9 = arith.constant 0 : index
    %8 = vector.load %arg5[%c0_8, %c0_9] : memref<32x128xbf16, #tpu.memory_space<vmem>>, vector<32x128xbf16>
    %c0_10 = arith.constant 0 : index
    %c0_11 = arith.constant 0 : index
    %9 = vector.load %arg7[%c0_10, %c0_11] : memref<1x32xf32, #tpu.memory_space<vmem>>, vector<1x32xf32>
    %c0_12 = arith.constant 0 : index
    %c0_13 = arith.constant 0 : index
    %10 = vector.load %arg8[%c0_12, %c0_13] : memref<1x1xf32, #tpu.memory_space<vmem>>, vector<1x1xf32>
    %c0_14 = arith.constant 0 : index
    %c0_15 = arith.constant 0 : index
    %11 = vector.load %arg3[%c0_14, %c0_15] : memref<8x1xi32, #tpu.memory_space<vmem>>, vector<8x1xi32>
    %c0_16 = arith.constant 0 : index
    %12 = memref.load %arg1[%c0_16] : memref<1xi32, #tpu.memory_space<smem>>
    %cst_17 = arith.constant 0.000000e+00 : f32
    %13 = vector.broadcast %cst_17 : f32 to vector<8x32xf32>
    %cst_18 = arith.constant 0.000000e+00 : f32
    %14 = vector.broadcast %cst_18 : f32 to vector<8x32xf32>
    %cst_19 = arith.constant 0.000000e+00 : f32
    %15 = vector.broadcast %cst_19 : f32 to vector<8x1xf32>
    %cst_20 = arith.constant 0.000000e+00 : f32
    %16 = vector.broadcast %cst_20 : f32 to vector<8x32xf32>
    %c0_i32 = arith.constant 0 : i32
    %c8_i32 = arith.constant 8 : i32
    %17 = arith.muli %c0_i32, %c8_i32 : i32
    %18 = tpu.assume_multiple %17, 8 : i32
    %19 = arith.index_cast %18 : i32 to index
    %c0_21 = arith.constant 0 : index
    %20 = vector.load %arg17[%19, %c0_21] : memref<64x128xf32, #tpu.memory_space<vmem>>, vector<8x128xf32>
    %21 = arith.truncf %13 : vector<8x32xf32> to vector<8x32xbf16>
    %cst_22 = arith.constant dense<0.000000e+00> : vector<8x128xf32>
    %22 = tpu.matmul %21, %8, %cst_22 {dimension_numbers = #tpu.dot_dimension_numbers<[1], [0], [0], [1], [0, 0, 1, 1], [], []>} : vector<8x32xbf16>, vector<32x128xbf16>, vector<8x128xf32> -> vector<8x128xf32>
    %23 = arith.addf %20, %22 : vector<8x128xf32>
    %24 = vector.extract_strided_slice %23 {offsets = [0, 0], sizes = [8, 96], strides = [1, 1]} : vector<8x128xf32> to vector<8x96xf32>
    %25 = arith.negf %24 : vector<8x96xf32>
    %26 = math.exp %25 : vector<8x96xf32>
    %cst_23 = arith.constant 1.000000e+00 : f32
    %27 = vector.broadcast %cst_23 : f32 to vector<8x96xf32>
    %28 = arith.addf %27, %26 : vector<8x96xf32>
    %29 = arith.divf %27, %28 : vector<8x96xf32>
    %30 = vector.extract_strided_slice %29 {offsets = [0, 0], sizes = [8, 32], strides = [1, 1]} : vector<8x96xf32> to vector<8x32xf32>
    %31 = vector.extract_strided_slice %29 {offsets = [0, 32], sizes = [8, 32], strides = [1, 1]} : vector<8x96xf32> to vector<8x32xf32>
    %32 = vector.extract_strided_slice %29 {offsets = [0, 64], sizes = [8, 32], strides = [1, 1]} : vector<8x96xf32> to vector<8x32xf32>
    %33 = vector.extract_strided_slice %23 {offsets = [0, 96], sizes = [8, 32], strides = [1, 1]} : vector<8x128xf32> to vector<8x32xf32>
    %34 = math.tanh %33 : vector<8x32xf32>
    %35 = arith.mulf %31, %14 : vector<8x32xf32>
    %36 = arith.mulf %30, %34 : vector<8x32xf32>
    %37 = arith.addf %35, %36 : vector<8x32xf32>
    %38 = math.tanh %37 : vector<8x32xf32>
    %39 = arith.mulf %32, %38 : vector<8x32xf32>
    %40 = vector.broadcast %c0_i32 : i32 to vector<8x1xi32>
    %41 = arith.cmpi sgt, %11, %40 : vector<8x1xi32>
    %42 = arith.extui %41 : vector<8x1xi1> to vector<8x1xi32>
    %43 = arith.sitofp %42 : vector<8x1xi32> to vector<8x1xf32>
    %44 = vector.broadcast %43 : vector<8x1xf32> to vector<8x32xf32>
    %45 = arith.mulf %39, %44 : vector<8x32xf32>
    %46 = vector.broadcast %9 : vector<1x32xf32> to vector<8x32xf32>
    %47 = arith.mulf %45, %46 : vector<8x32xf32>
    %cst_24 = arith.constant dense<0.000000e+00> : vector<8xf32>
    %48 = vector.multi_reduction <add>, %47, %cst_24 [1] : vector<8x32xf32> to vector<8xf32>
    %49 = vector.shape_cast %48 : vector<8xf32> to vector<8x1xf32>
    %50 = vector.broadcast %10 : vector<1x1xf32> to vector<8x1xf32>
    %51 = arith.addf %49, %50 : vector<8x1xf32>
    %52 = math.tanh %51 : vector<8x1xf32>
    %53 = math.exp %52 : vector<8x1xf32>
    %54 = arith.cmpi slt, %c0_i32, %12 : i32
    %55 = arith.extui %54 : i1 to i32
    %56 = arith.sitofp %55 : i32 to f32
    %57 = vector.broadcast %56 : f32 to vector<8x1xf32>
    %58 = arith.mulf %53, %57 : vector<8x1xf32>
    %59 = arith.addf %15, %58 : vector<8x1xf32>
    %60 = vector.broadcast %58 : vector<8x1xf32> to vector<8x32xf32>
    %61 = arith.mulf %60, %45 : vector<8x32xf32>
    %62 = arith.addf %16, %61 : vector<8x32xf32>
    %c1_i32 = arith.constant 1 : i32
    %c8_i32_25 = arith.constant 8 : i32
    %63 = arith.muli %c1_i32, %c8_i32_25 : i32
    %64 = tpu.assume_multiple %63, 8 : i32
    %65 = arith.index_cast %64 : i32 to index
    %c0_26 = arith.constant 0 : index
    %66 = vector.load %arg17[%65, %c0_26] : memref<64x128xf32, #tpu.memory_space<vmem>>, vector<8x128xf32>
    %67 = arith.truncf %39 : vector<8x32xf32> to vector<8x32xbf16>
    %cst_27 = arith.constant dense<0.000000e+00> : vector<8x128xf32>
    %68 = tpu.matmul %67, %8, %cst_27 {dimension_numbers = #tpu.dot_dimension_numbers<[1], [0], [0], [1], [0, 0, 1, 1], [], []>} : vector<8x32xbf16>, vector<32x128xbf16>, vector<8x128xf32> -> vector<8x128xf32>
    %69 = arith.addf %66, %68 : vector<8x128xf32>
    %70 = vector.extract_strided_slice %69 {offsets = [0, 0], sizes = [8, 96], strides = [1, 1]} : vector<8x128xf32> to vector<8x96xf32>
    %71 = arith.negf %70 : vector<8x96xf32>
    %72 = math.exp %71 : vector<8x96xf32>
    %cst_28 = arith.constant 1.000000e+00 : f32
    %73 = vector.broadcast %cst_28 : f32 to vector<8x96xf32>
    %74 = arith.addf %73, %72 : vector<8x96xf32>
    %75 = arith.divf %73, %74 : vector<8x96xf32>
    %76 = vector.extract_strided_slice %75 {offsets = [0, 0], sizes = [8, 32], strides = [1, 1]} : vector<8x96xf32> to vector<8x32xf32>
    %77 = vector.extract_strided_slice %75 {offsets = [0, 32], sizes = [8, 32], strides = [1, 1]} : vector<8x96xf32> to vector<8x32xf32>
    %78 = vector.extract_strided_slice %75 {offsets = [0, 64], sizes = [8, 32], strides = [1, 1]} : vector<8x96xf32> to vector<8x32xf32>
    %79 = vector.extract_strided_slice %69 {offsets = [0, 96], sizes = [8, 32], strides = [1, 1]} : vector<8x128xf32> to vector<8x32xf32>
    %80 = math.tanh %79 : vector<8x32xf32>
    %81 = arith.mulf %77, %37 : vector<8x32xf32>
    %82 = arith.mulf %76, %80 : vector<8x32xf32>
    %83 = arith.addf %81, %82 : vector<8x32xf32>
    %84 = math.tanh %83 : vector<8x32xf32>
    %85 = arith.mulf %78, %84 : vector<8x32xf32>
    %86 = vector.broadcast %c1_i32 : i32 to vector<8x1xi32>
    %87 = arith.cmpi sgt, %11, %86 : vector<8x1xi32>
    %88 = arith.extui %87 : vector<8x1xi1> to vector<8x1xi32>
    %89 = arith.sitofp %88 : vector<8x1xi32> to vector<8x1xf32>
    %90 = vector.broadcast %89 : vector<8x1xf32> to vector<8x32xf32>
    %91 = arith.mulf %85, %90 : vector<8x32xf32>
    %92 = vector.broadcast %9 : vector<1x32xf32> to vector<8x32xf32>
    %93 = arith.mulf %91, %92 : vector<8x32xf32>
    %cst_29 = arith.constant dense<0.000000e+00> : vector<8xf32>
    %94 = vector.multi_reduction <add>, %93, %cst_29 [1] : vector<8x32xf32> to vector<8xf32>
    %95 = vector.shape_cast %94 : vector<8xf32> to vector<8x1xf32>
    %96 = vector.broadcast %10 : vector<1x1xf32> to vector<8x1xf32>
    %97 = arith.addf %95, %96 : vector<8x1xf32>
    %98 = math.tanh %97 : vector<8x1xf32>
    %99 = math.exp %98 : vector<8x1xf32>
    %100 = arith.cmpi slt, %c1_i32, %12 : i32
    %101 = arith.extui %100 : i1 to i32
    %102 = arith.sitofp %101 : i32 to f32
    %103 = vector.broadcast %102 : f32 to vector<8x1xf32>
    %104 = arith.mulf %99, %103 : vector<8x1xf32>
    %105 = arith.addf %59, %104 : vector<8x1xf32>
    %106 = vector.broadcast %104 : vector<8x1xf32> to vector<8x32xf32>
    %107 = arith.mulf %106, %91 : vector<8x32xf32>
    %108 = arith.addf %62, %107 : vector<8x32xf32>
    %c2_i32 = arith.constant 2 : i32
    %c8_i32_30 = arith.constant 8 : i32
    %109 = arith.muli %c2_i32, %c8_i32_30 : i32
    %110 = tpu.assume_multiple %109, 8 : i32
    %111 = arith.index_cast %110 : i32 to index
    %c0_31 = arith.constant 0 : index
    %112 = vector.load %arg17[%111, %c0_31] : memref<64x128xf32, #tpu.memory_space<vmem>>, vector<8x128xf32>
    %113 = arith.truncf %85 : vector<8x32xf32> to vector<8x32xbf16>
    %cst_32 = arith.constant dense<0.000000e+00> : vector<8x128xf32>
    %114 = tpu.matmul %113, %8, %cst_32 {dimension_numbers = #tpu.dot_dimension_numbers<[1], [0], [0], [1], [0, 0, 1, 1], [], []>} : vector<8x32xbf16>, vector<32x128xbf16>, vector<8x128xf32> -> vector<8x128xf32>
    %115 = arith.addf %112, %114 : vector<8x128xf32>
    %116 = vector.extract_strided_slice %115 {offsets = [0, 0], sizes = [8, 96], strides = [1, 1]} : vector<8x128xf32> to vector<8x96xf32>
    %117 = arith.negf %116 : vector<8x96xf32>
    %118 = math.exp %117 : vector<8x96xf32>
    %cst_33 = arith.constant 1.000000e+00 : f32
    %119 = vector.broadcast %cst_33 : f32 to vector<8x96xf32>
    %120 = arith.addf %119, %118 : vector<8x96xf32>
    %121 = arith.divf %119, %120 : vector<8x96xf32>
    %122 = vector.extract_strided_slice %121 {offsets = [0, 0], sizes = [8, 32], strides = [1, 1]} : vector<8x96xf32> to vector<8x32xf32>
    %123 = vector.extract_strided_slice %121 {offsets = [0, 32], sizes = [8, 32], strides = [1, 1]} : vector<8x96xf32> to vector<8x32xf32>
    %124 = vector.extract_strided_slice %121 {offsets = [0, 64], sizes = [8, 32], strides = [1, 1]} : vector<8x96xf32> to vector<8x32xf32>
    %125 = vector.extract_strided_slice %115 {offsets = [0, 96], sizes = [8, 32], strides = [1, 1]} : vector<8x128xf32> to vector<8x32xf32>
    %126 = math.tanh %125 : vector<8x32xf32>
    %127 = arith.mulf %123, %83 : vector<8x32xf32>
    %128 = arith.mulf %122, %126 : vector<8x32xf32>
    %129 = arith.addf %127, %128 : vector<8x32xf32>
    %130 = math.tanh %129 : vector<8x32xf32>
    %131 = arith.mulf %124, %130 : vector<8x32xf32>
    %132 = vector.broadcast %c2_i32 : i32 to vector<8x1xi32>
    %133 = arith.cmpi sgt, %11, %132 : vector<8x1xi32>
    %134 = arith.extui %133 : vector<8x1xi1> to vector<8x1xi32>
    %135 = arith.sitofp %134 : vector<8x1xi32> to vector<8x1xf32>
    %136 = vector.broadcast %135 : vector<8x1xf32> to vector<8x32xf32>
    %137 = arith.mulf %131, %136 : vector<8x32xf32>
    %138 = vector.broadcast %9 : vector<1x32xf32> to vector<8x32xf32>
    %139 = arith.mulf %137, %138 : vector<8x32xf32>
    %cst_34 = arith.constant dense<0.000000e+00> : vector<8xf32>
    %140 = vector.multi_reduction <add>, %139, %cst_34 [1] : vector<8x32xf32> to vector<8xf32>
    %141 = vector.shape_cast %140 : vector<8xf32> to vector<8x1xf32>
    %142 = vector.broadcast %10 : vector<1x1xf32> to vector<8x1xf32>
    %143 = arith.addf %141, %142 : vector<8x1xf32>
    %144 = math.tanh %143 : vector<8x1xf32>
    %145 = math.exp %144 : vector<8x1xf32>
    %146 = arith.cmpi slt, %c2_i32, %12 : i32
    %147 = arith.extui %146 : i1 to i32
    %148 = arith.sitofp %147 : i32 to f32
    %149 = vector.broadcast %148 : f32 to vector<8x1xf32>
    %150 = arith.mulf %145, %149 : vector<8x1xf32>
    %151 = arith.addf %105, %150 : vector<8x1xf32>
    %152 = vector.broadcast %150 : vector<8x1xf32> to vector<8x32xf32>
    %153 = arith.mulf %152, %137 : vector<8x32xf32>
    %154 = arith.addf %108, %153 : vector<8x32xf32>
    %c3_i32 = arith.constant 3 : i32
    %c8_i32_35 = arith.constant 8 : i32
    %155 = arith.muli %c3_i32, %c8_i32_35 : i32
    %156 = tpu.assume_multiple %155, 8 : i32
    %157 = arith.index_cast %156 : i32 to index
    %c0_36 = arith.constant 0 : index
    %158 = vector.load %arg17[%157, %c0_36] : memref<64x128xf32, #tpu.memory_space<vmem>>, vector<8x128xf32>
    %159 = arith.truncf %131 : vector<8x32xf32> to vector<8x32xbf16>
    %cst_37 = arith.constant dense<0.000000e+00> : vector<8x128xf32>
    %160 = tpu.matmul %159, %8, %cst_37 {dimension_numbers = #tpu.dot_dimension_numbers<[1], [0], [0], [1], [0, 0, 1, 1], [], []>} : vector<8x32xbf16>, vector<32x128xbf16>, vector<8x128xf32> -> vector<8x128xf32>
    %161 = arith.addf %158, %160 : vector<8x128xf32>
    %162 = vector.extract_strided_slice %161 {offsets = [0, 0], sizes = [8, 96], strides = [1, 1]} : vector<8x128xf32> to vector<8x96xf32>
    %163 = arith.negf %162 : vector<8x96xf32>
    %164 = math.exp %163 : vector<8x96xf32>
    %cst_38 = arith.constant 1.000000e+00 : f32
    %165 = vector.broadcast %cst_38 : f32 to vector<8x96xf32>
    %166 = arith.addf %165, %164 : vector<8x96xf32>
    %167 = arith.divf %165, %166 : vector<8x96xf32>
    %168 = vector.extract_strided_slice %167 {offsets = [0, 0], sizes = [8, 32], strides = [1, 1]} : vector<8x96xf32> to vector<8x32xf32>
    %169 = vector.extract_strided_slice %167 {offsets = [0, 32], sizes = [8, 32], strides = [1, 1]} : vector<8x96xf32> to vector<8x32xf32>
    %170 = vector.extract_strided_slice %167 {offsets = [0, 64], sizes = [8, 32], strides = [1, 1]} : vector<8x96xf32> to vector<8x32xf32>
    %171 = vector.extract_strided_slice %161 {offsets = [0, 96], sizes = [8, 32], strides = [1, 1]} : vector<8x128xf32> to vector<8x32xf32>
    %172 = math.tanh %171 : vector<8x32xf32>
    %173 = arith.mulf %169, %129 : vector<8x32xf32>
    %174 = arith.mulf %168, %172 : vector<8x32xf32>
    %175 = arith.addf %173, %174 : vector<8x32xf32>
    %176 = math.tanh %175 : vector<8x32xf32>
    %177 = arith.mulf %170, %176 : vector<8x32xf32>
    %178 = vector.broadcast %c3_i32 : i32 to vector<8x1xi32>
    %179 = arith.cmpi sgt, %11, %178 : vector<8x1xi32>
    %180 = arith.extui %179 : vector<8x1xi1> to vector<8x1xi32>
    %181 = arith.sitofp %180 : vector<8x1xi32> to vector<8x1xf32>
    %182 = vector.broadcast %181 : vector<8x1xf32> to vector<8x32xf32>
    %183 = arith.mulf %177, %182 : vector<8x32xf32>
    %184 = vector.broadcast %9 : vector<1x32xf32> to vector<8x32xf32>
    %185 = arith.mulf %183, %184 : vector<8x32xf32>
    %cst_39 = arith.constant dense<0.000000e+00> : vector<8xf32>
    %186 = vector.multi_reduction <add>, %185, %cst_39 [1] : vector<8x32xf32> to vector<8xf32>
    %187 = vector.shape_cast %186 : vector<8xf32> to vector<8x1xf32>
    %188 = vector.broadcast %10 : vector<1x1xf32> to vector<8x1xf32>
    %189 = arith.addf %187, %188 : vector<8x1xf32>
    %190 = math.tanh %189 : vector<8x1xf32>
    %191 = math.exp %190 : vector<8x1xf32>
    %192 = arith.cmpi slt, %c3_i32, %12 : i32
    %193 = arith.extui %192 : i1 to i32
    %194 = arith.sitofp %193 : i32 to f32
    %195 = vector.broadcast %194 : f32 to vector<8x1xf32>
    %196 = arith.mulf %191, %195 : vector<8x1xf32>
    %197 = arith.addf %151, %196 : vector<8x1xf32>
    %198 = vector.broadcast %196 : vector<8x1xf32> to vector<8x32xf32>
    %199 = arith.mulf %198, %183 : vector<8x32xf32>
    %200 = arith.addf %154, %199 : vector<8x32xf32>
    %c4_i32 = arith.constant 4 : i32
    %c8_i32_40 = arith.constant 8 : i32
    %201 = arith.muli %c4_i32, %c8_i32_40 : i32
    %202 = tpu.assume_multiple %201, 8 : i32
    %203 = arith.index_cast %202 : i32 to index
    %c0_41 = arith.constant 0 : index
    %204 = vector.load %arg17[%203, %c0_41] : memref<64x128xf32, #tpu.memory_space<vmem>>, vector<8x128xf32>
    %205 = arith.truncf %177 : vector<8x32xf32> to vector<8x32xbf16>
    %cst_42 = arith.constant dense<0.000000e+00> : vector<8x128xf32>
    %206 = tpu.matmul %205, %8, %cst_42 {dimension_numbers = #tpu.dot_dimension_numbers<[1], [0], [0], [1], [0, 0, 1, 1], [], []>} : vector<8x32xbf16>, vector<32x128xbf16>, vector<8x128xf32> -> vector<8x128xf32>
    %207 = arith.addf %204, %206 : vector<8x128xf32>
    %208 = vector.extract_strided_slice %207 {offsets = [0, 0], sizes = [8, 96], strides = [1, 1]} : vector<8x128xf32> to vector<8x96xf32>
    %209 = arith.negf %208 : vector<8x96xf32>
    %210 = math.exp %209 : vector<8x96xf32>
    %cst_43 = arith.constant 1.000000e+00 : f32
    %211 = vector.broadcast %cst_43 : f32 to vector<8x96xf32>
    %212 = arith.addf %211, %210 : vector<8x96xf32>
    %213 = arith.divf %211, %212 : vector<8x96xf32>
    %214 = vector.extract_strided_slice %213 {offsets = [0, 0], sizes = [8, 32], strides = [1, 1]} : vector<8x96xf32> to vector<8x32xf32>
    %215 = vector.extract_strided_slice %213 {offsets = [0, 32], sizes = [8, 32], strides = [1, 1]} : vector<8x96xf32> to vector<8x32xf32>
    %216 = vector.extract_strided_slice %213 {offsets = [0, 64], sizes = [8, 32], strides = [1, 1]} : vector<8x96xf32> to vector<8x32xf32>
    %217 = vector.extract_strided_slice %207 {offsets = [0, 96], sizes = [8, 32], strides = [1, 1]} : vector<8x128xf32> to vector<8x32xf32>
    %218 = math.tanh %217 : vector<8x32xf32>
    %219 = arith.mulf %215, %175 : vector<8x32xf32>
    %220 = arith.mulf %214, %218 : vector<8x32xf32>
    %221 = arith.addf %219, %220 : vector<8x32xf32>
    %222 = math.tanh %221 : vector<8x32xf32>
    %223 = arith.mulf %216, %222 : vector<8x32xf32>
    %224 = vector.broadcast %c4_i32 : i32 to vector<8x1xi32>
    %225 = arith.cmpi sgt, %11, %224 : vector<8x1xi32>
    %226 = arith.extui %225 : vector<8x1xi1> to vector<8x1xi32>
    %227 = arith.sitofp %226 : vector<8x1xi32> to vector<8x1xf32>
    %228 = vector.broadcast %227 : vector<8x1xf32> to vector<8x32xf32>
    %229 = arith.mulf %223, %228 : vector<8x32xf32>
    %230 = vector.broadcast %9 : vector<1x32xf32> to vector<8x32xf32>
    %231 = arith.mulf %229, %230 : vector<8x32xf32>
    %cst_44 = arith.constant dense<0.000000e+00> : vector<8xf32>
    %232 = vector.multi_reduction <add>, %231, %cst_44 [1] : vector<8x32xf32> to vector<8xf32>
    %233 = vector.shape_cast %232 : vector<8xf32> to vector<8x1xf32>
    %234 = vector.broadcast %10 : vector<1x1xf32> to vector<8x1xf32>
    %235 = arith.addf %233, %234 : vector<8x1xf32>
    %236 = math.tanh %235 : vector<8x1xf32>
    %237 = math.exp %236 : vector<8x1xf32>
    %238 = arith.cmpi slt, %c4_i32, %12 : i32
    %239 = arith.extui %238 : i1 to i32
    %240 = arith.sitofp %239 : i32 to f32
    %241 = vector.broadcast %240 : f32 to vector<8x1xf32>
    %242 = arith.mulf %237, %241 : vector<8x1xf32>
    %243 = arith.addf %197, %242 : vector<8x1xf32>
    %244 = vector.broadcast %242 : vector<8x1xf32> to vector<8x32xf32>
    %245 = arith.mulf %244, %229 : vector<8x32xf32>
    %246 = arith.addf %200, %245 : vector<8x32xf32>
    %c5_i32 = arith.constant 5 : i32
    %c8_i32_45 = arith.constant 8 : i32
    %247 = arith.muli %c5_i32, %c8_i32_45 : i32
    %248 = tpu.assume_multiple %247, 8 : i32
    %249 = arith.index_cast %248 : i32 to index
    %c0_46 = arith.constant 0 : index
    %250 = vector.load %arg17[%249, %c0_46] : memref<64x128xf32, #tpu.memory_space<vmem>>, vector<8x128xf32>
    %251 = arith.truncf %223 : vector<8x32xf32> to vector<8x32xbf16>
    %cst_47 = arith.constant dense<0.000000e+00> : vector<8x128xf32>
    %252 = tpu.matmul %251, %8, %cst_47 {dimension_numbers = #tpu.dot_dimension_numbers<[1], [0], [0], [1], [0, 0, 1, 1], [], []>} : vector<8x32xbf16>, vector<32x128xbf16>, vector<8x128xf32> -> vector<8x128xf32>
    %253 = arith.addf %250, %252 : vector<8x128xf32>
    %254 = vector.extract_strided_slice %253 {offsets = [0, 0], sizes = [8, 96], strides = [1, 1]} : vector<8x128xf32> to vector<8x96xf32>
    %255 = arith.negf %254 : vector<8x96xf32>
    %256 = math.exp %255 : vector<8x96xf32>
    %cst_48 = arith.constant 1.000000e+00 : f32
    %257 = vector.broadcast %cst_48 : f32 to vector<8x96xf32>
    %258 = arith.addf %257, %256 : vector<8x96xf32>
    %259 = arith.divf %257, %258 : vector<8x96xf32>
    %260 = vector.extract_strided_slice %259 {offsets = [0, 0], sizes = [8, 32], strides = [1, 1]} : vector<8x96xf32> to vector<8x32xf32>
    %261 = vector.extract_strided_slice %259 {offsets = [0, 32], sizes = [8, 32], strides = [1, 1]} : vector<8x96xf32> to vector<8x32xf32>
    %262 = vector.extract_strided_slice %259 {offsets = [0, 64], sizes = [8, 32], strides = [1, 1]} : vector<8x96xf32> to vector<8x32xf32>
    %263 = vector.extract_strided_slice %253 {offsets = [0, 96], sizes = [8, 32], strides = [1, 1]} : vector<8x128xf32> to vector<8x32xf32>
    %264 = math.tanh %263 : vector<8x32xf32>
    %265 = arith.mulf %261, %221 : vector<8x32xf32>
    %266 = arith.mulf %260, %264 : vector<8x32xf32>
    %267 = arith.addf %265, %266 : vector<8x32xf32>
    %268 = math.tanh %267 : vector<8x32xf32>
    %269 = arith.mulf %262, %268 : vector<8x32xf32>
    %270 = vector.broadcast %c5_i32 : i32 to vector<8x1xi32>
    %271 = arith.cmpi sgt, %11, %270 : vector<8x1xi32>
    %272 = arith.extui %271 : vector<8x1xi1> to vector<8x1xi32>
    %273 = arith.sitofp %272 : vector<8x1xi32> to vector<8x1xf32>
    %274 = vector.broadcast %273 : vector<8x1xf32> to vector<8x32xf32>
    %275 = arith.mulf %269, %274 : vector<8x32xf32>
    %276 = vector.broadcast %9 : vector<1x32xf32> to vector<8x32xf32>
    %277 = arith.mulf %275, %276 : vector<8x32xf32>
    %cst_49 = arith.constant dense<0.000000e+00> : vector<8xf32>
    %278 = vector.multi_reduction <add>, %277, %cst_49 [1] : vector<8x32xf32> to vector<8xf32>
    %279 = vector.shape_cast %278 : vector<8xf32> to vector<8x1xf32>
    %280 = vector.broadcast %10 : vector<1x1xf32> to vector<8x1xf32>
    %281 = arith.addf %279, %280 : vector<8x1xf32>
    %282 = math.tanh %281 : vector<8x1xf32>
    %283 = math.exp %282 : vector<8x1xf32>
    %284 = arith.cmpi slt, %c5_i32, %12 : i32
    %285 = arith.extui %284 : i1 to i32
    %286 = arith.sitofp %285 : i32 to f32
    %287 = vector.broadcast %286 : f32 to vector<8x1xf32>
    %288 = arith.mulf %283, %287 : vector<8x1xf32>
    %289 = arith.addf %243, %288 : vector<8x1xf32>
    %290 = vector.broadcast %288 : vector<8x1xf32> to vector<8x32xf32>
    %291 = arith.mulf %290, %275 : vector<8x32xf32>
    %292 = arith.addf %246, %291 : vector<8x32xf32>
    %c6_i32 = arith.constant 6 : i32
    %c8_i32_50 = arith.constant 8 : i32
    %293 = arith.muli %c6_i32, %c8_i32_50 : i32
    %294 = tpu.assume_multiple %293, 8 : i32
    %295 = arith.index_cast %294 : i32 to index
    %c0_51 = arith.constant 0 : index
    %296 = vector.load %arg17[%295, %c0_51] : memref<64x128xf32, #tpu.memory_space<vmem>>, vector<8x128xf32>
    %297 = arith.truncf %269 : vector<8x32xf32> to vector<8x32xbf16>
    %cst_52 = arith.constant dense<0.000000e+00> : vector<8x128xf32>
    %298 = tpu.matmul %297, %8, %cst_52 {dimension_numbers = #tpu.dot_dimension_numbers<[1], [0], [0], [1], [0, 0, 1, 1], [], []>} : vector<8x32xbf16>, vector<32x128xbf16>, vector<8x128xf32> -> vector<8x128xf32>
    %299 = arith.addf %296, %298 : vector<8x128xf32>
    %300 = vector.extract_strided_slice %299 {offsets = [0, 0], sizes = [8, 96], strides = [1, 1]} : vector<8x128xf32> to vector<8x96xf32>
    %301 = arith.negf %300 : vector<8x96xf32>
    %302 = math.exp %301 : vector<8x96xf32>
    %cst_53 = arith.constant 1.000000e+00 : f32
    %303 = vector.broadcast %cst_53 : f32 to vector<8x96xf32>
    %304 = arith.addf %303, %302 : vector<8x96xf32>
    %305 = arith.divf %303, %304 : vector<8x96xf32>
    %306 = vector.extract_strided_slice %305 {offsets = [0, 0], sizes = [8, 32], strides = [1, 1]} : vector<8x96xf32> to vector<8x32xf32>
    %307 = vector.extract_strided_slice %305 {offsets = [0, 32], sizes = [8, 32], strides = [1, 1]} : vector<8x96xf32> to vector<8x32xf32>
    %308 = vector.extract_strided_slice %305 {offsets = [0, 64], sizes = [8, 32], strides = [1, 1]} : vector<8x96xf32> to vector<8x32xf32>
    %309 = vector.extract_strided_slice %299 {offsets = [0, 96], sizes = [8, 32], strides = [1, 1]} : vector<8x128xf32> to vector<8x32xf32>
    %310 = math.tanh %309 : vector<8x32xf32>
    %311 = arith.mulf %307, %267 : vector<8x32xf32>
    %312 = arith.mulf %306, %310 : vector<8x32xf32>
    %313 = arith.addf %311, %312 : vector<8x32xf32>
    %314 = math.tanh %313 : vector<8x32xf32>
    %315 = arith.mulf %308, %314 : vector<8x32xf32>
    %316 = vector.broadcast %c6_i32 : i32 to vector<8x1xi32>
    %317 = arith.cmpi sgt, %11, %316 : vector<8x1xi32>
    %318 = arith.extui %317 : vector<8x1xi1> to vector<8x1xi32>
    %319 = arith.sitofp %318 : vector<8x1xi32> to vector<8x1xf32>
    %320 = vector.broadcast %319 : vector<8x1xf32> to vector<8x32xf32>
    %321 = arith.mulf %315, %320 : vector<8x32xf32>
    %322 = vector.broadcast %9 : vector<1x32xf32> to vector<8x32xf32>
    %323 = arith.mulf %321, %322 : vector<8x32xf32>
    %cst_54 = arith.constant dense<0.000000e+00> : vector<8xf32>
    %324 = vector.multi_reduction <add>, %323, %cst_54 [1] : vector<8x32xf32> to vector<8xf32>
    %325 = vector.shape_cast %324 : vector<8xf32> to vector<8x1xf32>
    %326 = vector.broadcast %10 : vector<1x1xf32> to vector<8x1xf32>
    %327 = arith.addf %325, %326 : vector<8x1xf32>
    %328 = math.tanh %327 : vector<8x1xf32>
    %329 = math.exp %328 : vector<8x1xf32>
    %330 = arith.cmpi slt, %c6_i32, %12 : i32
    %331 = arith.extui %330 : i1 to i32
    %332 = arith.sitofp %331 : i32 to f32
    %333 = vector.broadcast %332 : f32 to vector<8x1xf32>
    %334 = arith.mulf %329, %333 : vector<8x1xf32>
    %335 = arith.addf %289, %334 : vector<8x1xf32>
    %336 = vector.broadcast %334 : vector<8x1xf32> to vector<8x32xf32>
    %337 = arith.mulf %336, %321 : vector<8x32xf32>
    %338 = arith.addf %292, %337 : vector<8x32xf32>
    %c7_i32 = arith.constant 7 : i32
    %c8_i32_55 = arith.constant 8 : i32
    %339 = arith.muli %c7_i32, %c8_i32_55 : i32
    %340 = tpu.assume_multiple %339, 8 : i32
    %341 = arith.index_cast %340 : i32 to index
    %c0_56 = arith.constant 0 : index
    %342 = vector.load %arg17[%341, %c0_56] : memref<64x128xf32, #tpu.memory_space<vmem>>, vector<8x128xf32>
    %343 = arith.truncf %315 : vector<8x32xf32> to vector<8x32xbf16>
    %cst_57 = arith.constant dense<0.000000e+00> : vector<8x128xf32>
    %344 = tpu.matmul %343, %8, %cst_57 {dimension_numbers = #tpu.dot_dimension_numbers<[1], [0], [0], [1], [0, 0, 1, 1], [], []>} : vector<8x32xbf16>, vector<32x128xbf16>, vector<8x128xf32> -> vector<8x128xf32>
    %345 = arith.addf %342, %344 : vector<8x128xf32>
    %346 = vector.extract_strided_slice %345 {offsets = [0, 0], sizes = [8, 96], strides = [1, 1]} : vector<8x128xf32> to vector<8x96xf32>
    %347 = arith.negf %346 : vector<8x96xf32>
    %348 = math.exp %347 : vector<8x96xf32>
    %cst_58 = arith.constant 1.000000e+00 : f32
    %349 = vector.broadcast %cst_58 : f32 to vector<8x96xf32>
    %350 = arith.addf %349, %348 : vector<8x96xf32>
    %351 = arith.divf %349, %350 : vector<8x96xf32>
    %352 = vector.extract_strided_slice %351 {offsets = [0, 0], sizes = [8, 32], strides = [1, 1]} : vector<8x96xf32> to vector<8x32xf32>
    %353 = vector.extract_strided_slice %351 {offsets = [0, 32], sizes = [8, 32], strides = [1, 1]} : vector<8x96xf32> to vector<8x32xf32>
    %354 = vector.extract_strided_slice %351 {offsets = [0, 64], sizes = [8, 32], strides = [1, 1]} : vector<8x96xf32> to vector<8x32xf32>
    %355 = vector.extract_strided_slice %345 {offsets = [0, 96], sizes = [8, 32], strides = [1, 1]} : vector<8x128xf32> to vector<8x32xf32>
    %356 = math.tanh %355 : vector<8x32xf32>
    %357 = arith.mulf %353, %313 : vector<8x32xf32>
    %358 = arith.mulf %352, %356 : vector<8x32xf32>
    %359 = arith.addf %357, %358 : vector<8x32xf32>
    %360 = math.tanh %359 : vector<8x32xf32>
    %361 = arith.mulf %354, %360 : vector<8x32xf32>
    %362 = vector.broadcast %c7_i32 : i32 to vector<8x1xi32>
    %363 = arith.cmpi sgt, %11, %362 : vector<8x1xi32>
    %364 = arith.extui %363 : vector<8x1xi1> to vector<8x1xi32>
    %365 = arith.sitofp %364 : vector<8x1xi32> to vector<8x1xf32>
    %366 = vector.broadcast %365 : vector<8x1xf32> to vector<8x32xf32>
    %367 = arith.mulf %361, %366 : vector<8x32xf32>
    %368 = vector.broadcast %9 : vector<1x32xf32> to vector<8x32xf32>
    %369 = arith.mulf %367, %368 : vector<8x32xf32>
    %cst_59 = arith.constant dense<0.000000e+00> : vector<8xf32>
    %370 = vector.multi_reduction <add>, %369, %cst_59 [1] : vector<8x32xf32> to vector<8xf32>
    %371 = vector.shape_cast %370 : vector<8xf32> to vector<8x1xf32>
    %372 = vector.broadcast %10 : vector<1x1xf32> to vector<8x1xf32>
    %373 = arith.addf %371, %372 : vector<8x1xf32>
    %374 = math.tanh %373 : vector<8x1xf32>
    %375 = math.exp %374 : vector<8x1xf32>
    %376 = arith.cmpi slt, %c7_i32, %12 : i32
    %377 = arith.extui %376 : i1 to i32
    %378 = arith.sitofp %377 : i32 to f32
    %379 = vector.broadcast %378 : f32 to vector<8x1xf32>
    %380 = arith.mulf %375, %379 : vector<8x1xf32>
    %381 = arith.addf %335, %380 : vector<8x1xf32>
    %382 = vector.broadcast %380 : vector<8x1xf32> to vector<8x32xf32>
    %383 = arith.mulf %382, %367 : vector<8x32xf32>
    %384 = arith.addf %338, %383 : vector<8x32xf32>
    %c8_i32_60 = arith.constant 8 : i32
    %cst_61 = arith.constant 1.000000e+00 : f32
    %385 = vector.broadcast %cst_61 : f32 to vector<8x1xf32>
    %386 = arith.divf %385, %381 : vector<8x1xf32>
    %387 = vector.broadcast %386 : vector<8x1xf32> to vector<8x32xf32>
    %388 = arith.mulf %384, %387 : vector<8x32xf32>
    %c0_62 = arith.constant 0 : index
    %c0_63 = arith.constant 0 : index
    %389 = vector.load %arg9[%c0_62, %c0_63] : memref<8x5xf32, #tpu.memory_space<vmem>>, vector<8x5xf32>
    %c0_64 = arith.constant 0 : index
    %c0_65 = arith.constant 0 : index
    %390 = vector.load %arg10[%c0_64, %c0_65] : memref<5x32xf32, #tpu.memory_space<vmem>>, vector<5x32xf32>
    %cst_66 = arith.constant dense<0.000000e+00> : vector<8x32xf32>
    %391 = tpu.matmul %389, %390, %cst_66 {dimension_numbers = #tpu.dot_dimension_numbers<[1], [0], [0], [1], [0, 0, 1, 1], [], []>} : vector<8x5xf32>, vector<5x32xf32>, vector<8x32xf32> -> vector<8x32xf32>
    %c0_67 = arith.constant 0 : index
    %c0_68 = arith.constant 0 : index
    %392 = vector.load %arg11[%c0_67, %c0_68] : memref<1x32xf32, #tpu.memory_space<vmem>>, vector<1x32xf32>
    %393 = vector.broadcast %392 : vector<1x32xf32> to vector<8x32xf32>
    %394 = arith.addf %391, %393 : vector<8x32xf32>
    %cst_69 = arith.constant 0.000000e+00 : f32
    %395 = vector.broadcast %cst_69 : f32 to vector<8x32xf32>
    %396 = arith.maximumf %394, %395 : vector<8x32xf32>
    %c0_70 = arith.constant 0 : index
    %c0_71 = arith.constant 0 : index
    %397 = vector.load %arg12[%c0_70, %c0_71] : memref<64x32xf32, #tpu.memory_space<vmem>>, vector<64x32xf32>
    %398 = vector.extract_strided_slice %397 {offsets = [0, 0], sizes = [32, 32], strides = [1, 1]} : vector<64x32xf32> to vector<32x32xf32>
    %cst_72 = arith.constant dense<0.000000e+00> : vector<8x32xf32>
    %399 = tpu.matmul %388, %398, %cst_72 {dimension_numbers = #tpu.dot_dimension_numbers<[1], [0], [0], [1], [0, 0, 1, 1], [], []>} : vector<8x32xf32>, vector<32x32xf32>, vector<8x32xf32> -> vector<8x32xf32>
    %400 = vector.extract_strided_slice %397 {offsets = [32, 0], sizes = [32, 32], strides = [1, 1]} : vector<64x32xf32> to vector<32x32xf32>
    %cst_73 = arith.constant dense<0.000000e+00> : vector<8x32xf32>
    %401 = tpu.matmul %396, %400, %cst_73 {dimension_numbers = #tpu.dot_dimension_numbers<[1], [0], [0], [1], [0, 0, 1, 1], [], []>} : vector<8x32xf32>, vector<32x32xf32>, vector<8x32xf32> -> vector<8x32xf32>
    %402 = arith.addf %399, %401 : vector<8x32xf32>
    %c0_74 = arith.constant 0 : index
    %c0_75 = arith.constant 0 : index
    %403 = vector.load %arg13[%c0_74, %c0_75] : memref<1x32xf32, #tpu.memory_space<vmem>>, vector<1x32xf32>
    %404 = vector.broadcast %403 : vector<1x32xf32> to vector<8x32xf32>
    %405 = arith.addf %402, %404 : vector<8x32xf32>
    %cst_76 = arith.constant 0.000000e+00 : f32
    %406 = vector.broadcast %cst_76 : f32 to vector<8x32xf32>
    %407 = arith.maximumf %405, %406 : vector<8x32xf32>
    %c0_77 = arith.constant 0 : index
    %c0_78 = arith.constant 0 : index
    %408 = vector.load %arg14[%c0_77, %c0_78] : memref<1x32xf32, #tpu.memory_space<vmem>>, vector<1x32xf32>
    %cst_79 = arith.constant dense<0.000000e+00> : vector<1x8xf32>
    %409 = tpu.matmul %408, %407, %cst_79 {dimension_numbers = #tpu.dot_dimension_numbers<[1], [1], [0], [0], [0, 0, 1, 0], [], []>} : vector<1x32xf32>, vector<8x32xf32>, vector<1x8xf32> -> vector<1x8xf32>
    %c0_80 = arith.constant 0 : index
    %c0_81 = arith.constant 0 : index
    %410 = vector.load %arg15[%c0_80, %c0_81] : memref<1x1xf32, #tpu.memory_space<vmem>>, vector<1x1xf32>
    %411 = vector.broadcast %410 : vector<1x1xf32> to vector<1x8xf32>
    %412 = arith.addf %409, %411 : vector<1x8xf32>
    %c0_82 = arith.constant 0 : index
    %c0_83 = arith.constant 0 : index
    %c0_84 = arith.constant 0 : index
    %413 = vector.load %arg16[%c0_82, %c0_83, %c0_84] : memref<1x1x8xf32, #tpu.memory_space<vmem>>, vector<1x1x8xf32>
    %414 = vector.shape_cast %413 : vector<1x1x8xf32> to vector<1x8xf32>
    %415 = vector.shape_cast %412 : vector<1x8xf32> to vector<1x1x8xf32>
    tpu.vector_store %arg16[%c0_82, %c0_83, %c0_84], %415 {strides = array<i32>} : memref<1x1x8xf32, #tpu.memory_space<vmem>>, vector<1x1x8xf32>,
    return
  }
  func.func @transform_0(%arg0: i32, %arg1: memref<1xi32, #tpu.memory_space<smem>>) -> (i32, i32, i32) {
    %c0_i32 = arith.constant 0 : i32
    %c0_i32_0 = arith.constant 0 : i32
    %c0_i32_1 = arith.constant 0 : i32
    return %arg0, %c0_i32, %c0_i32_0 : i32, i32, i32
  }
  func.func @transform_1(%arg0: i32, %arg1: memref<1xi32, #tpu.memory_space<smem>>) -> (i32, i32) {
    %c0_i32 = arith.constant 0 : i32
    %c0_i32_0 = arith.constant 0 : i32
    return %arg0, %c0_i32 : i32, i32
  }
  func.func @transform_2(%arg0: i32, %arg1: memref<1xi32, #tpu.memory_space<smem>>) -> (i32, i32) {
    %c0_i32 = arith.constant 0 : i32
    %c0_i32_0 = arith.constant 0 : i32
    %c0_i32_1 = arith.constant 0 : i32
    return %c0_i32, %c0_i32_0 : i32, i32
  }
  func.func @transform_3(%arg0: i32, %arg1: memref<1xi32, #tpu.memory_space<smem>>) -> (i32, i32) {
    %c0_i32 = arith.constant 0 : i32
    %c0_i32_0 = arith.constant 0 : i32
    %c0_i32_1 = arith.constant 0 : i32
    return %c0_i32, %c0_i32_0 : i32, i32
  }
  func.func @transform_4(%arg0: i32, %arg1: memref<1xi32, #tpu.memory_space<smem>>) -> (i32, i32) {
    %c0_i32 = arith.constant 0 : i32
    %c0_i32_0 = arith.constant 0 : i32
    %c0_i32_1 = arith.constant 0 : i32
    return %c0_i32, %c0_i32_0 : i32, i32
  }
  func.func @transform_5(%arg0: i32, %arg1: memref<1xi32, #tpu.memory_space<smem>>) -> (i32, i32) {
    %c0_i32 = arith.constant 0 : i32
    %c0_i32_0 = arith.constant 0 : i32
    %c0_i32_1 = arith.constant 0 : i32
    return %c0_i32, %c0_i32_0 : i32, i32
  }
  func.func @transform_6(%arg0: i32, %arg1: memref<1xi32, #tpu.memory_space<smem>>) -> (i32, i32) {
    %c0_i32 = arith.constant 0 : i32
    %c0_i32_0 = arith.constant 0 : i32
    %c0_i32_1 = arith.constant 0 : i32
    return %c0_i32, %c0_i32_0 : i32, i32
  }
  func.func @transform_7(%arg0: i32, %arg1: memref<1xi32, #tpu.memory_space<smem>>) -> (i32, i32) {
    %c0_i32 = arith.constant 0 : i32
    %c0_i32_0 = arith.constant 0 : i32
    return %arg0, %c0_i32 : i32, i32
  }
  func.func @transform_8(%arg0: i32, %arg1: memref<1xi32, #tpu.memory_space<smem>>) -> (i32, i32) {
    %c0_i32 = arith.constant 0 : i32
    %c0_i32_0 = arith.constant 0 : i32
    %c0_i32_1 = arith.constant 0 : i32
    return %c0_i32, %c0_i32_0 : i32, i32
  }
  func.func @transform_9(%arg0: i32, %arg1: memref<1xi32, #tpu.memory_space<smem>>) -> (i32, i32) {
    %c0_i32 = arith.constant 0 : i32
    %c0_i32_0 = arith.constant 0 : i32
    %c0_i32_1 = arith.constant 0 : i32
    return %c0_i32, %c0_i32_0 : i32, i32
  }
  func.func @transform_10(%arg0: i32, %arg1: memref<1xi32, #tpu.memory_space<smem>>) -> (i32, i32) {
    %c0_i32 = arith.constant 0 : i32
    %c0_i32_0 = arith.constant 0 : i32
    %c0_i32_1 = arith.constant 0 : i32
    return %c0_i32, %c0_i32_0 : i32, i32
  }
  func.func @transform_11(%arg0: i32, %arg1: memref<1xi32, #tpu.memory_space<smem>>) -> (i32, i32) {
    %c0_i32 = arith.constant 0 : i32
    %c0_i32_0 = arith.constant 0 : i32
    %c0_i32_1 = arith.constant 0 : i32
    return %c0_i32, %c0_i32_0 : i32, i32
  }
  func.func @transform_12(%arg0: i32, %arg1: memref<1xi32, #tpu.memory_space<smem>>) -> (i32, i32) {
    %c0_i32 = arith.constant 0 : i32
    %c0_i32_0 = arith.constant 0 : i32
    %c0_i32_1 = arith.constant 0 : i32
    return %c0_i32, %c0_i32_0 : i32, i32
  }
  func.func @transform_13(%arg0: i32, %arg1: memref<1xi32, #tpu.memory_space<smem>>) -> (i32, i32) {
    %c0_i32 = arith.constant 0 : i32
    %c0_i32_0 = arith.constant 0 : i32
    %c0_i32_1 = arith.constant 0 : i32
    return %c0_i32, %c0_i32_0 : i32, i32
  }
  func.func @transform_14(%arg0: i32, %arg1: memref<1xi32, #tpu.memory_space<smem>>) -> (i32, i32, i32) {
    %c0_i32 = arith.constant 0 : i32
    %c0_i32_0 = arith.constant 0 : i32
    %c0_i32_1 = arith.constant 0 : i32
    return %arg0, %c0_i32, %c0_i32_0 : i32, i32, i32
  }
}

</mosaic_0001>

<llo_original>
// kernel: embolism_forward.1
$region0: #{embolism_forward.1}
  #allocation0 [shape = 'u32[]', space=smem, size = 0x4, offset = 0x4, fixed_abs, tag = 'smem constant byte address 0x4 - core index']
  #allocation1 [shape = 'u32[144,128]{1,0:T(1,128)}', space=vmem, size = 0x12000, scoped, tag = 'internal scratch']
  #allocation2 [shape = 'f32[64,128]{1,0:T(8,128)}', space=vmem, size = 0x8000, scoped, tag = 'scratch operand']
  #allocation3 [shape = 's32[1]{0}', space=sflag, size = 0x4, scoped, tag = 'scoped memory for embolism_forward.1']
  #allocation4 [shape = 's32[1]{0:T(128)S(6)}', space=smem, size = 0x200, scoped, tag = 'prefetched SMEM operand 0']
  #allocation5 [shape = 'f32[1,1]{1,0:T(1,128)S(1)}', space=vmem, size = 0x200, scoped, tag = 'scoped memory for embolism_forward.1']
  #allocation6 [shape = 'f32[1,1]{1,0:T(1,128)S(1)}', space=vmem, size = 0x200, scoped, tag = 'scoped memory for embolism_forward.1']
  %s0 = inlined_call_operand.<no memory space> [shape: s32[1], index: 0, kind: input, shape index: {}]
  %s1 = inlined_call_operand.vmem [shape: bf16[1,64,6], index: 1, kind: input, shape index: {}]
  %s2 = inlined_call_operand.vmem [shape: s32[8,1], index: 2, kind: input, shape index: {}]
  %s3 = inlined_call_operand.vmem [shape: bf16[6,128], index: 3, kind: input, shape index: {}]
  %s4 = inlined_call_operand.vmem [shape: bf16[32,128], index: 4, kind: input, shape index: {}]
  %s5 = inlined_call_operand.vmem [shape: f32[1,128], index: 5, kind: input, shape index: {}]
  %s6 = inlined_call_operand.vmem [shape: f32[1,32], index: 6, kind: input, shape index: {}]
  %s7 = inlined_call_operand.<no memory space> [shape: f32[1,1], index: 7, kind: input, shape index: {}]
  %s8 = inlined_call_operand.vmem [shape: f32[8,5], index: 8, kind: input, shape index: {}]
  %s9 = inlined_call_operand.vmem [shape: f32[5,32], index: 9, kind: input, shape index: {}]
  %s10 = inlined_call_operand.vmem [shape: f32[1,32], index: 10, kind: input, shape index: {}]
  %s11 = inlined_call_operand.vmem [shape: f32[64,32], index: 11, kind: input, shape index: {}]
  %s12 = inlined_call_operand.vmem [shape: f32[1,32], index: 12, kind: input, shape index: {}]
  %s13 = inlined_call_operand.vmem [shape: f32[1,32], index: 13, kind: input, shape index: {}]
  %s14 = inlined_call_operand.<no memory space> [shape: f32[1,1], index: 14, kind: input, shape index: {}]
  %s15 = inlined_call_operand.vmem [shape: f32[1,1,8], index: 15, kind: output, shape index: {}]
  %s16 = sld [smem:[#allocation0]]
  $region66: #{embolism_forward.1} parent=0
    _
  %s18 = ssub.s32 1, %s16
  %s19 = scalar_select 0, %s18, %s16
  %20 = sst [smem:[#allocation4]] %s0
  %v21 = vstv %s7
  %22 = vst [vmem:[#allocation5] sm:$0x1] %v21
  %v23 = vstv %s14
  %24 = vst [vmem:[#allocation6] sm:$0x1] %v23
  // Predicated region
  $region2: #{embolism_forward.1} parent=0 // pred_check
    _
  $region3: #{embolism_forward.1} parent=0 // pred_check_branch
    %26 = sbr.rel (0) target = $region5
  $region4: #{embolism_forward.1} parent=0 // pred_region
    _
  $region5: #{embolism_forward.1} parent=0 // pred_fallthru
    _
  // Predicated region
  $region6: #{embolism_forward.1} parent=0 // pred_check
    _
  $region7: #{embolism_forward.1} parent=0 // pred_check_branch
    %28 = sbr.rel (0) target = $region9
  $region8: #{embolism_forward.1} parent=0 // pred_region
    _
  $region9: #{embolism_forward.1} parent=0 // pred_fallthru
    _
  // Predicated region
  $region10: #{embolism_forward.1} parent=0 // pred_check
    _
  $region11: #{embolism_forward.1} parent=0 // pred_check_branch
    %30 = sbr.rel (0) target = $region13
  $region12: #{embolism_forward.1} parent=0 // pred_region
    _
  $region13: #{embolism_forward.1} parent=0 // pred_fallthru
    _
  // Predicated region
  $region14: #{embolism_forward.1} parent=0 // pred_check
    _
  $region15: #{embolism_forward.1} parent=0 // pred_check_branch
    %32 = sbr.rel (0) target = $region17
  $region16: #{embolism_forward.1} parent=0 // pred_region
    _
  $region17: #{embolism_forward.1} parent=0 // pred_fallthru
    _
  // Predicated region
  $region18: #{embolism_forward.1} parent=0 // pred_check
    _
  $region19: #{embolism_forward.1} parent=0 // pred_check_branch
    %34 = sbr.rel (0) target = $region21
  $region20: #{embolism_forward.1} parent=0 // pred_region
    _
  $region21: #{embolism_forward.1} parent=0 // pred_fallthru
    _
  // Predicated region
  $region22: #{embolism_forward.1} parent=0 // pred_check
    _
  $region23: #{embolism_forward.1} parent=0 // pred_check_branch
    %36 = sbr.rel (0) target = $region25
  $region24: #{embolism_forward.1} parent=0 // pred_region
    _
  $region25: #{embolism_forward.1} parent=0 // pred_fallthru
    _
  // Predicated region
  $region26: #{embolism_forward.1} parent=0 // pred_check
    _
  $region27: #{embolism_forward.1} parent=0 // pred_check_branch
    %38 = sbr.rel (0) target = $region29
  $region28: #{embolism_forward.1} parent=0 // pred_region
    _
  $region29: #{embolism_forward.1} parent=0 // pred_fallthru
    _
  // Predicated region
  $region30: #{embolism_forward.1} parent=0 // pred_check
    _
  $region31: #{embolism_forward.1} parent=0 // pred_check_branch
    %40 = sbr.rel (0) target = $region33
  $region32: #{embolism_forward.1} parent=0 // pred_region
    _
  $region33: #{embolism_forward.1} parent=0 // pred_fallthru
    _
  // Predicated region
  $region34: #{embolism_forward.1} parent=0 // pred_check
    _
  $region35: #{embolism_forward.1} parent=0 // pred_check_branch
    %42 = sbr.rel (0) target = $region37
  $region36: #{embolism_forward.1} parent=0 // pred_region
    _
  $region37: #{embolism_forward.1} parent=0 // pred_fallthru
    _
  // Predicated region
  $region38: #{embolism_forward.1} parent=0 // pred_check
    _
  $region39: #{embolism_forward.1} parent=0 // pred_check_branch
    %44 = sbr.rel (0) target = $region41
  $region40: #{embolism_forward.1} parent=0 // pred_region
    _
  $region41: #{embolism_forward.1} parent=0 // pred_fallthru
    _
  // Predicated region
  $region42: #{embolism_forward.1} parent=0 // pred_check
    _
  $region43: #{embolism_forward.1} parent=0 // pred_check_branch
    %46 = sbr.rel (0) target = $region45
  $region44: #{embolism_forward.1} parent=0 // pred_region
    _
  $region45: #{embolism_forward.1} parent=0 // pred_fallthru
    _
  // Predicated region
  $region46: #{embolism_forward.1} parent=0 // pred_check
    _
  $region47: #{embolism_forward.1} parent=0 // pred_check_branch
    %48 = sbr.rel (0) target = $region49
  $region48: #{embolism_forward.1} parent=0 // pred_region
    _
  $region49: #{embolism_forward.1} parent=0 // pred_fallthru
    _
  // Predicated region
  $region50: #{embolism_forward.1} parent=0 // pred_check
    _
  $region51: #{embolism_forward.1} parent=0 // pred_check_branch
    %50 = sbr.rel (0) target = $region53
  $region52: #{embolism_forward.1} parent=0 // pred_region
    _
  $region53: #{embolism_forward.1} parent=0 // pred_fallthru
    _
  // Predicated region
  $region54: #{embolism_forward.1} parent=0 // pred_check
    _
  $region55: #{embolism_forward.1} parent=0 // pred_check_branch
    %52 = sbr.rel (0) target = $region57
  $region56: #{embolism_forward.1} parent=0 // pred_region
    _
  $region57: #{embolism_forward.1} parent=0 // pred_fallthru
    _
  %v54 = vld [vmem:[%s1] sm:$0xf]
  %v55 = vld [vmem:[%s1 + $0x4] sm:$0xf]
  %v56 = vld [vmem:[%s1 + $0x8] sm:$0xf]
  %v57 = vld [vmem:[%s1 + $0xc] sm:$0xf]
  %v58 = vld [vmem:[%s1 + $0x10] sm:$0xf]
  %v59 = vld [vmem:[%s1 + $0x14] sm:$0xf]
  %v60 = vld [vmem:[%s1 + $0x18] sm:$0xf]
  %v61 = vld [vmem:[%s1 + $0x1c] sm:$0xf]
  %v62 = vld [vmem:[%s3] sm:$0x7]
  %v63 = vld [vmem:[%s5] sm:$0x1]
  %v65 = vlaneseq
  %v66 = vshrl.u32 %v65, 7
  %v67 = vsub.s32 0, %v66
  %v68 = vrot.slane %v63, %v67
  %v78 = vunpack.c.l.b16 %v54
  %v79 = vunpack.c.l.b16 %v55
  %v80 = vunpack.c.l.b16 %v56
  %v81 = vunpack.c.l.b16 %v57
  %v82 = vunpack.c.l.b16 %v58
  %v83 = vunpack.c.l.b16 %v59
  %v84 = vunpack.c.l.b16 %v60
  %v85 = vunpack.c.l.b16 %v61
  %v86 = vpack.c.b16 %v79, %v78
  %v87 = vpack.c.b16 %v81, %v80
  %v88 = vpack.c.b16 %v83, %v82
  %v89 = vpack.c.b16 %v85, %v84
  %vm90 = vcmask 48128
  %v92 = vsel %vm90, %v86, 0
  %v95 = vsel %vm90, %v87, 0
  %v98 = vsel %vm90, %v88, 0
  %v101 = vsel %vm90, %v89, 0
  %vm103 = vcmask 1042432
  %v105 = vsel %vm103, %v62, 0
  %107 = vmatprep.subr.bf16.mxu0 0
  %108 = vmatpush1.bf16.msra.mxu0 %v105
  %109 = vmatprep.subr.bf16.mxu0 0
  %110 = vmatpush1.bf16.msra.mxu0 0
  %111 = vmatprep.subr.bf16.mxu0 0
  %112 = vmatpush1.bf16.msra.mxu0 0
  %113 = vmatprep.subr.bf16.mxu0 0
  %114 = vmatpush1.bf16.msra.mxu0 0
  %115 = vmatprep.subr.bf16.mxu0 0
  %116 = vmatpush1.bf16.msra.mxu0 0
  %117 = vmatprep.subr.bf16.mxu0 0
  %118 = vmatpush1.bf16.msra.mxu0 0
  %119 = vmatprep.subr.bf16.mxu0 0
  %120 = vmatpush1.bf16.msra.mxu0 0
  %121 = vmatprep.subr.bf16.mxu0 0
  %122 = vmatpush1.bf16.msra.mxu0 0
  %123 = vmatprep.subr.bf16.mxu0 0
  %124 = vmatpush1.bf16.msra.mxu0 0
  %125 = vmatprep.subr.bf16.mxu0 0
  %126 = vmatpush1.bf16.msra.mxu0 0
  %127 = vmatprep.subr.bf16.mxu0 0
  %128 = vmatpush1.bf16.msra.mxu0 0
  %129 = vmatprep.subr.bf16.mxu0 0
  %130 = vmatpush1.bf16.msra.mxu0 0
  %131 = vmatprep.subr.bf16.mxu0 0
  %132 = vmatpush1.bf16.msra.mxu0 0
  %133 = vmatprep.subr.bf16.mxu0 0
  %134 = vmatpush1.bf16.msra.mxu0 0
  %135 = vmatprep.subr.bf16.mxu0 0
  %136 = vmatpush1.bf16.msra.mxu0 0
  %137 = vmatprep.subr.bf16.mxu0 0
  %138 = vmatpush1.bf16.msra.mxu0 0
  %139 = vmatprep.mubr.bf16.mxu0 0
  %140 = vmatmul.mubr.bf16.gmra.mrb[0].mxu0 %v92
  %v141 = vpop.f32.mrb[0].mxu0
  %v142 = vadd.f32 %v68, %v141
  %v143 = vpop.f32.mrb[0].mxu0
  %v144 = vpop.f32.mrb[0].mxu0
  %v145 = vadd.f32 %v68, %v144
  %v146 = vpop.f32.mrb[0].mxu0
  %147 = vmatprep.mubr.bf16.mxu0 0
  %148 = vmatmul.mubr.bf16.gmra.mrb[0].mxu0 %v95
  %v149 = vpop.f32.mrb[0].mxu0
  %v150 = vadd.f32 %v68, %v149
  %v151 = vpop.f32.mrb[0].mxu0
  %v152 = vpop.f32.mrb[0].mxu0
  %v153 = vadd.f32 %v68, %v152
  %v154 = vpop.f32.mrb[0].mxu0
  %155 = vmatprep.mubr.bf16.mxu0 0
  %156 = vmatmul.mubr.bf16.gmra.mrb[0].mxu0 %v98
  %v157 = vpop.f32.mrb[0].mxu0
  %v158 = vadd.f32 %v68, %v157
  %v159 = vpop.f32.mrb[0].mxu0
  %v160 = vpop.f32.mrb[0].mxu0
  %v161 = vadd.f32 %v68, %v160
  %v162 = vpop.f32.mrb[0].mxu0
  %163 = vmatprep.mubr.bf16.mxu0 0
  %164 = vmatmul.mubr.bf16.gmra.mrb[0].mxu0 %v101
  %v165 = vpop.f32.mrb[0].mxu0
  %v166 = vadd.f32 %v68, %v165
  %v167 = vpop.f32.mrb[0].mxu0
  %v168 = vpop.f32.mrb[0].mxu0
  %v169 = vadd.f32 %v68, %v168
  %v170 = vpop.f32.mrb[0].mxu0
  %171 = vdwg.mxu0
  %172 = vst [vmem:[#allocation2] sm:$0xff] %v142
  %173 = vst [vmem:[#allocation2 + $0x8] sm:$0xff] %v145
  %174 = vst [vmem:[#allocation2 + $0x10] sm:$0xff] %v150
  %175 = vst [vmem:[#allocation2 + $0x18] sm:$0xff] %v153
  %176 = vst [vmem:[#allocation2 + $0x20] sm:$0xff] %v158
  %177 = vst [vmem:[#allocation2 + $0x28] sm:$0xff] %v161
  %178 = vst [vmem:[#allocation2 + $0x30] sm:$0xff] %v166
  %179 = vst [vmem:[#allocation2 + $0x38] sm:$0xff] %v169
  %v180 = vld [vmem:[%s4] sm:$0xf]
  %v181 = vld [vmem:[%s4 + $0x4] sm:$0xf]
  %v182 = vld [vmem:[%s4 + $0x8] sm:$0xf]
  %v183 = vld [vmem:[%s4 + $0xc] sm:$0xf]
  %v184 = vld [vmem:[%s6] sm:$0x1]
  %v185 = vld [vmem:[#allocation5] sm:$0x1]
  %v186 = vld [vmem:[%s2] sm:$0xff]
  %s187 = sld [smem:[#allocation4]]
  %v188 = vld [vmem:[#allocation2] sm:$0xff]
  %v193 = vunpack.c.l.b16 %v180
  %v194 = vunpack.c.l.b16 %v181
  %v195 = vunpack.c.l.b16 %v182
  %v196 = vunpack.c.l.b16 %v183
  %v197 = vpack.c.b16 %v194, %v193
  %v198 = vpack.c.b16 %v196, %v195
  %vm201 = vcmask 261120
  %v203 = vsel %vm201, 0, 0
  %205 = vmatprep.subr.bf16.mxu0 0
  %206 = vmatpush1.bf16.msra.mxu0 %v197
  %207 = vmatprep.subr.bf16.mxu0 0
  %208 = vmatpush1.bf16.msra.mxu0 %v198
  %209 = vmatprep.subr.bf16.mxu0 0
  %210 = vmatpush1.bf16.msra.mxu0 0
  %211 = vmatprep.subr.bf16.mxu0 0
  %212 = vmatpush1.bf16.msra.mxu0 0
  %213 = vmatprep.subr.bf16.mxu0 0
  %214 = vmatpush1.bf16.msra.mxu0 0
  %215 = vmatprep.subr.bf16.mxu0 0
  %216 = vmatpush1.bf16.msra.mxu0 0
  %217 = vmatprep.subr.bf16.mxu0 0
  %218 = vmatpush1.bf16.msra.mxu0 0
  %219 = vmatprep.subr.bf16.mxu0 0
  %220 = vmatpush1.bf16.msra.mxu0 0
  %221 = vmatprep.subr.bf16.mxu0 0
  %222 = vmatpush1.bf16.msra.mxu0 0
  %223 = vmatprep.subr.bf16.mxu0 0
  %224 = vmatpush1.bf16.msra.mxu0 0
  %225 = vmatprep.subr.bf16.mxu0 0
  %226 = vmatpush1.bf16.msra.mxu0 0
  %227 = vmatprep.subr.bf16.mxu0 0
  %228 = vmatpush1.bf16.msra.mxu0 0
  %229 = vmatprep.subr.bf16.mxu0 0
  %230 = vmatpush1.bf16.msra.mxu0 0
  %231 = vmatprep.subr.bf16.mxu0 0
  %232 = vmatpush1.bf16.msra.mxu0 0
  %233 = vmatprep.subr.bf16.mxu0 0
  %234 = vmatpush1.bf16.msra.mxu0 0
  %235 = vmatprep.subr.bf16.mxu0 0
  %236 = vmatpush1.bf16.msra.mxu0 0
  %237 = vmatprep.mubr.bf16.mxu0 0
  %238 = vmatmul.mubr.bf16.gmra.mrb[0].mxu0 %v203
  %v239 = vpop.f32.mrb[0].mxu0
  %v240 = vadd.f32 0.0, %v239
  %v241 = vpop.f32.mrb[0].mxu0
  %v242 = vpop.f32.mrb[0].mxu0
  %v243 = vpop.f32.mrb[0].mxu0
  %244 = vdwg.mxu0
  %v245 = vadd.f32 %v188, %v240
  %v246 = vxor.u32 %v245, 2147483648
  %v247 = vmul.f32 %v246, 1.442695
  %v248 = vpow.pop %v247
  %v249 = vadd.f32 %v248, 1.0
  %v250 = vrcp.pop %v249
  %v251 = vmul.f32 1.0, %v250
  %v252 = vtanh.pop %v245
  %v253 = vmul.f32 %v251, 0.0
  %255 = vrot.lane.b32.xlu0 %v252, 32
  %v256 = vpop.permute.xlu0 %255
  %v258 = vmul.f32 %v251, %v256
  %260 = vrot.lane.b32.xlu0 %v258, 32
  %v261 = vpop.permute.xlu0 %260
  %v263 = vadd.f32 %v253, %v261
  %v264 = vtanh.pop %v263
  %266 = vrot.lane.b32.xlu0 %v264, 32
  %v267 = vpop.permute.xlu0 %266
  %v269 = vmul.f32 %v251, %v267
  %vm270 = vcmp.gt.s32.totalorder %v186, 0
  %v271 = vsel %vm270, 1, 0
  %v272 = vcvt.s32.f32 %v271
  %274 = vset.pattern.permute.xlu0 0
  %275 = vperm.xlu0 %274, %v272
  %v276 = vpop.permute.xlu0 %275
  %v278 = vmul.f32 %v269, %v276
  %v280 = vlaneseq
  %v281 = vshrl.u32 %v280, 7
  %v282 = vsub.s32 0, %v281
  %v283 = vrot.slane %v184, %v282
  %284 = vrot.lane.b32.xlu0 %v283, 64
  %v285 = vpop.permute.xlu0 %284
  %v287 = vmul.f32 %v278, %v285
  %289 = vrot.lane.b32.xlu0 %v287, 64
  %v290 = vpop.permute.xlu0 %289
  %v292 = vsel %vm201, %v290, 0.0
  %293 = vadd.xlane.f32.xlu0 %v292
  %v294 = vpop.xlane.xlu0 %293
  %v296 = vlaneseq
  %v297 = vshrl.u32 %v296, 7
  %v298 = vsub.s32 0, %v297
  %v299 = vrot.slane %v185, %v298
  %v301 = vadd.f32 %v294, %v299
  %v302 = vtanh.pop %v301
  %v303 = vmul.f32 %v302, 1.442695
  %v304 = vpow.pop %v303
  %p305 = scmp.gt.s32.totalorder %s187, 0
  %s306 = scalar_select %p305, 1, 0
  %s307 = scvt.s32.f32 %s306
  %v308 = vstv %s307
  %v309 = vmul.f32 %v304, %v308
  %v310 = vadd.f32 %v309, 0.0
  %312 = vset.pattern.permute.xlu0 0
  %313 = vperm.xlu0 %312, %v309
  %v314 = vpop.permute.xlu0 %313
  %v316 = vmul.f32 %v314, %v278
  %v317 = vadd.f32 %v316, 0.0
  %s318 = scalar_lea.vmem [#allocation2], 8
  %v319 = vld [vmem:[%s318] sm:$0xff]
  %v320 = vpack.c.bf16 %v269, %v269
  %322 = vrot.lane.b32.xlu0 %v320, 64
  %v323 = vpop.permute.xlu0 %322
  %v325 = vsel %vm201, %v323, 0
  %327 = vmatprep.subr.bf16.mxu0 0
  %328 = vmatpush1.bf16.msra.mxu0 %v197
  %329 = vmatprep.subr.bf16.mxu0 0
  %330 = vmatpush1.bf16.msra.mxu0 %v198
  %331 = vmatprep.subr.bf16.mxu0 0
  %332 = vmatpush1.bf16.msra.mxu0 0
  %333 = vmatprep.subr.bf16.mxu0 0
  %334 = vmatpush1.bf16.msra.mxu0 0
  %335 = vmatprep.subr.bf16.mxu0 0
  %336 = vmatpush1.bf16.msra.mxu0 0
  %337 = vmatprep.subr.bf16.mxu0 0
  %338 = vmatpush1.bf16.msra.mxu0 0
  %339 = vmatprep.subr.bf16.mxu0 0
  %340 = vmatpush1.bf16.msra.mxu0 0
  %341 = vmatprep.subr.bf16.mxu0 0
  %342 = vmatpush1.bf16.msra.mxu0 0
  %343 = vmatprep.subr.bf16.mxu0 0
  %344 = vmatpush1.bf16.msra.mxu0 0
  %345 = vmatprep.subr.bf16.mxu0 0
  %346 = vmatpush1.bf16.msra.mxu0 0
  %347 = vmatprep.subr.bf16.mxu0 0
  %348 = vmatpush1.bf16.msra.mxu0 0
  %349 = vmatprep.subr.bf16.mxu0 0
  %350 = vmatpush1.bf16.msra.mxu0 0
  %351 = vmatprep.subr.bf16.mxu0 0
  %352 = vmatpush1.bf16.msra.mxu0 0
  %353 = vmatprep.subr.bf16.mxu0 0
  %354 = vmatpush1.bf16.msra.mxu0 0
  %355 = vmatprep.subr.bf16.mxu0 0
  %356 = vmatpush1.bf16.msra.mxu0 0
  %357 = vmatprep.subr.bf16.mxu0 0
  %358 = vmatpush1.bf16.msra.mxu0 0
  %359 = vmatprep.mubr.bf16.mxu0 0
  %360 = vmatmul.mubr.bf16.gmra.mrb[0].mxu0 %v325
  %v361 = vpop.f32.mrb[0].mxu0
  %v362 = vadd.f32 0.0, %v361
  %v363 = vpop.f32.mrb[0].mxu0
  %v364 = vpop.f32.mrb[0].mxu0
  %v365 = vpop.f32.mrb[0].mxu0
  %366 = vdwg.mxu0
  %v367 = vadd.f32 %v319, %v362
  %v368 = vxor.u32 %v367, 2147483648
  %v369 = vmul.f32 %v368, 1.442695
  %v370 = vpow.pop %v369
  %v371 = vadd.f32 %v370, 1.0
  %v372 = vrcp.pop %v371
  %v373 = vmul.f32 1.0, %v372
  %v374 = vtanh.pop %v367
  %v375 = vmul.f32 %v373, %v263
  %377 = vrot.lane.b32.xlu0 %v374, 32
  %v378 = vpop.permute.xlu0 %377
  %v380 = vmul.f32 %v373, %v378
  %382 = vrot.lane.b32.xlu0 %v380, 32
  %v383 = vpop.permute.xlu0 %382
  %v385 = vadd.f32 %v375, %v383
  %v386 = vtanh.pop %v385
  %388 = vrot.lane.b32.xlu0 %v386, 32
  %v389 = vpop.permute.xlu0 %388
  %v391 = vmul.f32 %v373, %v389
  %vm392 = vcmp.gt.s32.totalorder %v186, 1
  %v393 = vsel %vm392, 1, 0
  %v394 = vcvt.s32.f32 %v393
  %396 = vset.pattern.permute.xlu0 0
  %397 = vperm.xlu0 %396, %v394
  %v398 = vpop.permute.xlu0 %397
  %v400 = vmul.f32 %v391, %v398
  %v401 = vmul.f32 %v400, %v285
  %403 = vrot.lane.b32.xlu0 %v401, 64
  %v404 = vpop.permute.xlu0 %403
  %v406 = vsel %vm201, %v404, 0.0
  %407 = vadd.xlane.f32.xlu0 %v406
  %v408 = vpop.xlane.xlu0 %407
  %v409 = vadd.f32 %v408, %v299
  %v410 = vtanh.pop %v409
  %v411 = vmul.f32 %v410, 1.442695
  %v412 = vpow.pop %v411
  %p413 = scmp.gt.s32.totalorder %s187, 1
  %s414 = scalar_select %p413, 1, 0
  %s415 = scvt.s32.f32 %s414
  %v416 = vstv %s415
  %v417 = vmul.f32 %v412, %v416
  %v418 = vadd.f32 %v310, %v417
  %420 = vset.pattern.permute.xlu0 0
  %421 = vperm.xlu0 %420, %v417
  %v422 = vpop.permute.xlu0 %421
  %v424 = vmul.f32 %v422, %v400
  %v425 = vadd.f32 %v317, %v424
  %s426 = scalar_lea.vmem [#allocation2], 16
  %v427 = vld [vmem:[%s426] sm:$0xff]
  %v428 = vpack.c.bf16 %v391, %v391
  %430 = vrot.lane.b32.xlu0 %v428, 64
  %v431 = vpop.permute.xlu0 %430
  %v433 = vsel %vm201, %v431, 0
  %435 = vmatprep.subr.bf16.mxu0 0
  %436 = vmatpush1.bf16.msra.mxu0 %v197
  %437 = vmatprep.subr.bf16.mxu0 0
  %438 = vmatpush1.bf16.msra.mxu0 %v198
  %439 = vmatprep.subr.bf16.mxu0 0
  %440 = vmatpush1.bf16.msra.mxu0 0
  %441 = vmatprep.subr.bf16.mxu0 0
  %442 = vmatpush1.bf16.msra.mxu0 0
  %443 = vmatprep.subr.bf16.mxu0 0
  %444 = vmatpush1.bf16.msra.mxu0 0
  %445 = vmatprep.subr.bf16.mxu0 0
  %446 = vmatpush1.bf16.msra.mxu0 0
  %447 = vmatprep.subr.bf16.mxu0 0
  %448 = vmatpush1.bf16.msra.mxu0 0
  %449 = vmatprep.subr.bf16.mxu0 0
  %450 = vmatpush1.bf16.msra.mxu0 0
  %451 = vmatprep.subr.bf16.mxu0 0
  %452 = vmatpush1.bf16.msra.mxu0 0
  %453 = vmatprep.subr.bf16.mxu0 0
  %454 = vmatpush1.bf16.msra.mxu0 0
  %455 = vmatprep.subr.bf16.mxu0 0
  %456 = vmatpush1.bf16.msra.mxu0 0
  %457 = vmatprep.subr.bf16.mxu0 0
  %458 = vmatpush1.bf16.msra.mxu0 0
  %459 = vmatprep.subr.bf16.mxu0 0
  %460 = vmatpush1.bf16.msra.mxu0 0
  %461 = vmatprep.subr.bf16.mxu0 0
  %462 = vmatpush1.bf16.msra.mxu0 0
  %463 = vmatprep.subr.bf16.mxu0 0
  %464 = vmatpush1.bf16.msra.mxu0 0
  %465 = vmatprep.subr.bf16.mxu0 0
  %466 = vmatpush1.bf16.msra.mxu0 0
  %467 = vmatprep.mubr.bf16.mxu0 0
  %468 = vmatmul.mubr.bf16.gmra.mrb[0].mxu0 %v433
  %v469 = vpop.f32.mrb[0].mxu0
  %v470 = vadd.f32 0.0, %v469
  %v471 = vpop.f32.mrb[0].mxu0
  %v472 = vpop.f32.mrb[0].mxu0
  %v473 = vpop.f32.mrb[0].mxu0
  %474 = vdwg.mxu0
  %v475 = vadd.f32 %v427, %v470
  %v476 = vxor.u32 %v475, 2147483648
  %v477 = vmul.f32 %v476, 1.442695
  %v478 = vpow.pop %v477
  %v479 = vadd.f32 %v478, 1.0
  %v480 = vrcp.pop %v479
  %v481 = vmul.f32 1.0, %v480
  %v482 = vtanh.pop %v475
  %v483 = vmul.f32 %v481, %v385
  %485 = vrot.lane.b32.xlu0 %v482, 32
  %v486 = vpop.permute.xlu0 %485
  %v488 = vmul.f32 %v481, %v486
  %490 = vrot.lane.b32.xlu0 %v488, 32
  %v491 = vpop.permute.xlu0 %490
  %v493 = vadd.f32 %v483, %v491
  %v494 = vtanh.pop %v493
  %496 = vrot.lane.b32.xlu0 %v494, 32
  %v497 = vpop.permute.xlu0 %496
  %v499 = vmul.f32 %v481, %v497
  %vm500 = vcmp.gt.s32.totalorder %v186, 2
  %v501 = vsel %vm500, 1, 0
  %v502 = vcvt.s32.f32 %v501
  %504 = vset.pattern.permute.xlu0 0
  %505 = vperm.xlu0 %504, %v502
  %v506 = vpop.permute.xlu0 %505
  %v508 = vmul.f32 %v499, %v506
  %v509 = vmul.f32 %v508, %v285
  %511 = vrot.lane.b32.xlu0 %v509, 64
  %v512 = vpop.permute.xlu0 %511
  %v514 = vsel %vm201, %v512, 0.0
  %515 = vadd.xlane.f32.xlu0 %v514
  %v516 = vpop.xlane.xlu0 %515
  %v517 = vadd.f32 %v516, %v299
  %v518 = vtanh.pop %v517
  %v519 = vmul.f32 %v518, 1.442695
  %v520 = vpow.pop %v519
  %p521 = scmp.gt.s32.totalorder %s187, 2
  %s522 = scalar_select %p521, 1, 0
  %s523 = scvt.s32.f32 %s522
  %v524 = vstv %s523
  %v525 = vmul.f32 %v520, %v524
  %v526 = vadd.f32 %v418, %v525
  %528 = vset.pattern.permute.xlu0 0
  %529 = vperm.xlu0 %528, %v525
  %v530 = vpop.permute.xlu0 %529
  %v532 = vmul.f32 %v530, %v508
  %v533 = vadd.f32 %v425, %v532
  %s534 = scalar_lea.vmem [#allocation2], 24
  %v535 = vld [vmem:[%s534] sm:$0xff]
  %v536 = vpack.c.bf16 %v499, %v499
  %538 = vrot.lane.b32.xlu0 %v536, 64
  %v539 = vpop.permute.xlu0 %538
  %v541 = vsel %vm201, %v539, 0
  %543 = vmatprep.subr.bf16.mxu0 0
  %544 = vmatpush1.bf16.msra.mxu0 %v197
  %545 = vmatprep.subr.bf16.mxu0 0
  %546 = vmatpush1.bf16.msra.mxu0 %v198
  %547 = vmatprep.subr.bf16.mxu0 0
  %548 = vmatpush1.bf16.msra.mxu0 0
  %549 = vmatprep.subr.bf16.mxu0 0
  %550 = vmatpush1.bf16.msra.mxu0 0
  %551 = vmatprep.subr.bf16.mxu0 0
  %552 = vmatpush1.bf16.msra.mxu0 0
  %553 = vmatprep.subr.bf16.mxu0 0
  %554 = vmatpush1.bf16.msra.mxu0 0
  %555 = vmatprep.subr.bf16.mxu0 0
  %556 = vmatpush1.bf16.msra.mxu0 0
  %557 = vmatprep.subr.bf16.mxu0 0
  %558 = vmatpush1.bf16.msra.mxu0 0
  %559 = vmatprep.subr.bf16.mxu0 0
  %560 = vmatpush1.bf16.msra.mxu0 0
  %561 = vmatprep.subr.bf16.mxu0 0
  %562 = vmatpush1.bf16.msra.mxu0 0
  %563 = vmatprep.subr.bf16.mxu0 0
  %564 = vmatpush1.bf16.msra.mxu0 0
  %565 = vmatprep.subr.bf16.mxu0 0
  %566 = vmatpush1.bf16.msra.mxu0 0
  %567 = vmatprep.subr.bf16.mxu0 0
  %568 = vmatpush1.bf16.msra.mxu0 0
  %569 = vmatprep.subr.bf16.mxu0 0
  %570 = vmatpush1.bf16.msra.mxu0 0
  %571 = vmatprep.subr.bf16.mxu0 0
  %572 = vmatpush1.bf16.msra.mxu0 0
  %573 = vmatprep.subr.bf16.mxu0 0
  %574 = vmatpush1.bf16.msra.mxu0 0
  %575 = vmatprep.mubr.bf16.mxu0 0
  %576 = vmatmul.mubr.bf16.gmra.mrb[0].mxu0 %v541
  %v577 = vpop.f32.mrb[0].mxu0
  %v578 = vadd.f32 0.0, %v577
  %v579 = vpop.f32.mrb[0].mxu0
  %v580 = vpop.f32.mrb[0].mxu0
  %v581 = vpop.f32.mrb[0].mxu0
  %582 = vdwg.mxu0
  %v583 = vadd.f32 %v535, %v578
  %v584 = vxor.u32 %v583, 2147483648
  %v585 = vmul.f32 %v584, 1.442695
  %v586 = vpow.pop %v585
  %v587 = vadd.f32 %v586, 1.0
  %v588 = vrcp.pop %v587
  %v589 = vmul.f32 1.0, %v588
  %v590 = vtanh.pop %v583
  %v591 = vmul.f32 %v589, %v493
  %593 = vrot.lane.b32.xlu0 %v590, 32
  %v594 = vpop.permute.xlu0 %593
  %v596 = vmul.f32 %v589, %v594
  %598 = vrot.lane.b32.xlu0 %v596, 32
  %v599 = vpop.permute.xlu0 %598
  %v601 = vadd.f32 %v591, %v599
  %v602 = vtanh.pop %v601
  %604 = vrot.lane.b32.xlu0 %v602, 32
  %v605 = vpop.permute.xlu0 %604
  %v607 = vmul.f32 %v589, %v605
  %vm608 = vcmp.gt.s32.totalorder %v186, 3
  %v609 = vsel %vm608, 1, 0
  %v610 = vcvt.s32.f32 %v609
  %612 = vset.pattern.permute.xlu0 0
  %613 = vperm.xlu0 %612, %v610
  %v614 = vpop.permute.xlu0 %613
  %v616 = vmul.f32 %v607, %v614
  %v617 = vmul.f32 %v616, %v285
  %619 = vrot.lane.b32.xlu0 %v617, 64
  %v620 = vpop.permute.xlu0 %619
  %v622 = vsel %vm201, %v620, 0.0
  %623 = vadd.xlane.f32.xlu0 %v622
  %v624 = vpop.xlane.xlu0 %623
  %v625 = vadd.f32 %v624, %v299
  %v626 = vtanh.pop %v625
  %v627 = vmul.f32 %v626, 1.442695
  %v628 = vpow.pop %v627
  %p629 = scmp.gt.s32.totalorder %s187, 3
  %s630 = scalar_select %p629, 1, 0
  %s631 = scvt.s32.f32 %s630
  %v632 = vstv %s631
  %v633 = vmul.f32 %v628, %v632
  %v634 = vadd.f32 %v526, %v633
  %636 = vset.pattern.permute.xlu0 0
  %637 = vperm.xlu0 %636, %v633
  %v638 = vpop.permute.xlu0 %637
  %v640 = vmul.f32 %v638, %v616
  %v641 = vadd.f32 %v533, %v640
  %s642 = scalar_lea.vmem [#allocation2], 32
  %v643 = vld [vmem:[%s642] sm:$0xff]
  %v644 = vpack.c.bf16 %v607, %v607
  %646 = vrot.lane.b32.xlu0 %v644, 64
  %v647 = vpop.permute.xlu0 %646
  %v649 = vsel %vm201, %v647, 0
  %651 = vmatprep.subr.bf16.mxu0 0
  %652 = vmatpush1.bf16.msra.mxu0 %v197
  %653 = vmatprep.subr.bf16.mxu0 0
  %654 = vmatpush1.bf16.msra.mxu0 %v198
  %655 = vmatprep.subr.bf16.mxu0 0
  %656 = vmatpush1.bf16.msra.mxu0 0
  %657 = vmatprep.subr.bf16.mxu0 0
  %658 = vmatpush1.bf16.msra.mxu0 0
  %659 = vmatprep.subr.bf16.mxu0 0
  %660 = vmatpush1.bf16.msra.mxu0 0
  %661 = vmatprep.subr.bf16.mxu0 0
  %662 = vmatpush1.bf16.msra.mxu0 0
  %663 = vmatprep.subr.bf16.mxu0 0
  %664 = vmatpush1.bf16.msra.mxu0 0
  %665 = vmatprep.subr.bf16.mxu0 0
  %666 = vmatpush1.bf16.msra.mxu0 0
  %667 = vmatprep.subr.bf16.mxu0 0
  %668 = vmatpush1.bf16.msra.mxu0 0
  %669 = vmatprep.subr.bf16.mxu0 0
  %670 = vmatpush1.bf16.msra.mxu0 0
  %671 = vmatprep.subr.bf16.mxu0 0
  %672 = vmatpush1.bf16.msra.mxu0 0
  %673 = vmatprep.subr.bf16.mxu0 0
  %674 = vmatpush1.bf16.msra.mxu0 0
  %675 = vmatprep.subr.bf16.mxu0 0
  %676 = vmatpush1.bf16.msra.mxu0 0
  %677 = vmatprep.subr.bf16.mxu0 0
  %678 = vmatpush1.bf16.msra.mxu0 0
  %679 = vmatprep.subr.bf16.mxu0 0
  %680 = vmatpush1.bf16.msra.mxu0 0
  %681 = vmatprep.subr.bf16.mxu0 0
  %682 = vmatpush1.bf16.msra.mxu0 0
  %683 = vmatprep.mubr.bf16.mxu0 0
  %684 = vmatmul.mubr.bf16.gmra.mrb[0].mxu0 %v649
  %v685 = vpop.f32.mrb[0].mxu0
  %v686 = vadd.f32 0.0, %v685
  %v687 = vpop.f32.mrb[0].mxu0
  %v688 = vpop.f32.mrb[0].mxu0
  %v689 = vpop.f32.mrb[0].mxu0
  %690 = vdwg.mxu0
  %v691 = vadd.f32 %v643, %v686
  %v692 = vxor.u32 %v691, 2147483648
  %v693 = vmul.f32 %v692, 1.442695
  %v694 = vpow.pop %v693
  %v695 = vadd.f32 %v694, 1.0
  %v696 = vrcp.pop %v695
  %v697 = vmul.f32 1.0, %v696
  %v698 = vtanh.pop %v691
  %v699 = vmul.f32 %v697, %v601
  %701 = vrot.lane.b32.xlu0 %v698, 32
  %v702 = vpop.permute.xlu0 %701
  %v704 = vmul.f32 %v697, %v702
  %706 = vrot.lane.b32.xlu0 %v704, 32
  %v707 = vpop.permute.xlu0 %706
  %v709 = vadd.f32 %v699, %v707
  %v710 = vtanh.pop %v709
  %712 = vrot.lane.b32.xlu0 %v710, 32
  %v713 = vpop.permute.xlu0 %712
  %v715 = vmul.f32 %v697, %v713
  %vm716 = vcmp.gt.s32.totalorder %v186, 4
  %v717 = vsel %vm716, 1, 0
  %v718 = vcvt.s32.f32 %v717
  %720 = vset.pattern.permute.xlu0 0
  %721 = vperm.xlu0 %720, %v718
  %v722 = vpop.permute.xlu0 %721
  %v724 = vmul.f32 %v715, %v722
  %v725 = vmul.f32 %v724, %v285
  %727 = vrot.lane.b32.xlu0 %v725, 64
  %v728 = vpop.permute.xlu0 %727
  %v730 = vsel %vm201, %v728, 0.0
  %731 = vadd.xlane.f32.xlu0 %v730
  %v732 = vpop.xlane.xlu0 %731
  %v733 = vadd.f32 %v732, %v299
  %v734 = vtanh.pop %v733
  %v735 = vmul.f32 %v734, 1.442695
  %v736 = vpow.pop %v735
  %p737 = scmp.gt.s32.totalorder %s187, 4
  %s738 = scalar_select %p737, 1, 0
  %s739 = scvt.s32.f32 %s738
  %v740 = vstv %s739
  %v741 = vmul.f32 %v736, %v740
  %v742 = vadd.f32 %v634, %v741
  %744 = vset.pattern.permute.xlu0 0
  %745 = vperm.xlu0 %744, %v741
  %v746 = vpop.permute.xlu0 %745
  %v748 = vmul.f32 %v746, %v724
  %v749 = vadd.f32 %v641, %v748
  %s750 = scalar_lea.vmem [#allocation2], 40
  %v751 = vld [vmem:[%s750] sm:$0xff]
  %v752 = vpack.c.bf16 %v715, %v715
  %754 = vrot.lane.b32.xlu0 %v752, 64
  %v755 = vpop.permute.xlu0 %754
  %v757 = vsel %vm201, %v755, 0
  %759 = vmatprep.subr.bf16.mxu0 0
  %760 = vmatpush1.bf16.msra.mxu0 %v197
  %761 = vmatprep.subr.bf16.mxu0 0
  %762 = vmatpush1.bf16.msra.mxu0 %v198
  %763 = vmatprep.subr.bf16.mxu0 0
  %764 = vmatpush1.bf16.msra.mxu0 0
  %765 = vmatprep.subr.bf16.mxu0 0
  %766 = vmatpush1.bf16.msra.mxu0 0
  %767 = vmatprep.subr.bf16.mxu0 0
  %768 = vmatpush1.bf16.msra.mxu0 0
  %769 = vmatprep.subr.bf16.mxu0 0
  %770 = vmatpush1.bf16.msra.mxu0 0
  %771 = vmatprep.subr.bf16.mxu0 0
  %772 = vmatpush1.bf16.msra.mxu0 0
  %773 = vmatprep.subr.bf16.mxu0 0
  %774 = vmatpush1.bf16.msra.mxu0 0
  %775 = vmatprep.subr.bf16.mxu0 0
  %776 = vmatpush1.bf16.msra.mxu0 0
  %777 = vmatprep.subr.bf16.mxu0 0
  %778 = vmatpush1.bf16.msra.mxu0 0
  %779 = vmatprep.subr.bf16.mxu0 0
  %780 = vmatpush1.bf16.msra.mxu0 0
  %781 = vmatprep.subr.bf16.mxu0 0
  %782 = vmatpush1.bf16.msra.mxu0 0
  %783 = vmatprep.subr.bf16.mxu0 0
  %784 = vmatpush1.bf16.msra.mxu0 0
  %785 = vmatprep.subr.bf16.mxu0 0
  %786 = vmatpush1.bf16.msra.mxu0 0
  %787 = vmatprep.subr.bf16.mxu0 0
  %788 = vmatpush1.bf16.msra.mxu0 0
  %789 = vmatprep.subr.bf16.mxu0 0
  %790 = vmatpush1.bf16.msra.mxu0 0
  %791 = vmatprep.mubr.bf16.mxu0 0
  %792 = vmatmul.mubr.bf16.gmra.mrb[0].mxu0 %v757
  %v793 = vpop.f32.mrb[0].mxu0
  %v794 = vadd.f32 0.0, %v793
  %v795 = vpop.f32.mrb[0].mxu0
  %v796 = vpop.f32.mrb[0].mxu0
  %v797 = vpop.f32.mrb[0].mxu0
  %798 = vdwg.mxu0
  %v799 = vadd.f32 %v751, %v794
  %v800 = vxor.u32 %v799, 2147483648
  %v801 = vmul.f32 %v800, 1.442695
  %v802 = vpow.pop %v801
  %v803 = vadd.f32 %v802, 1.0
  %v804 = vrcp.pop %v803
  %v805 = vmul.f32 1.0, %v804
  %v806 = vtanh.pop %v799
  %v807 = vmul.f32 %v805, %v709
  %809 = vrot.lane.b32.xlu0 %v806, 32
  %v810 = vpop.permute.xlu0 %809
  %v812 = vmul.f32 %v805, %v810
  %814 = vrot.lane.b32.xlu0 %v812, 32
  %v815 = vpop.permute.xlu0 %814
  %v817 = vadd.f32 %v807, %v815
  %v818 = vtanh.pop %v817
  %820 = vrot.lane.b32.xlu0 %v818, 32
  %v821 = vpop.permute.xlu0 %820
  %v823 = vmul.f32 %v805, %v821
  %vm824 = vcmp.gt.s32.totalorder %v186, 5
  %v825 = vsel %vm824, 1, 0
  %v826 = vcvt.s32.f32 %v825
  %828 = vset.pattern.permute.xlu0 0
  %829 = vperm.xlu0 %828, %v826
  %v830 = vpop.permute.xlu0 %829
  %v832 = vmul.f32 %v823, %v830
  %v833 = vmul.f32 %v832, %v285
  %835 = vrot.lane.b32.xlu0 %v833, 64
  %v836 = vpop.permute.xlu0 %835
  %v838 = vsel %vm201, %v836, 0.0
  %839 = vadd.xlane.f32.xlu0 %v838
  %v840 = vpop.xlane.xlu0 %839
  %v841 = vadd.f32 %v840, %v299
  %v842 = vtanh.pop %v841
  %v843 = vmul.f32 %v842, 1.442695
  %v844 = vpow.pop %v843
  %p845 = scmp.gt.s32.totalorder %s187, 5
  %s846 = scalar_select %p845, 1, 0
  %s847 = scvt.s32.f32 %s846
  %v848 = vstv %s847
  %v849 = vmul.f32 %v844, %v848
  %v850 = vadd.f32 %v742, %v849
  %852 = vset.pattern.permute.xlu0 0
  %853 = vperm.xlu0 %852, %v849
  %v854 = vpop.permute.xlu0 %853
  %v856 = vmul.f32 %v854, %v832
  %v857 = vadd.f32 %v749, %v856
  %s858 = scalar_lea.vmem [#allocation2], 48
  %v859 = vld [vmem:[%s858] sm:$0xff]
  %v860 = vpack.c.bf16 %v823, %v823
  %862 = vrot.lane.b32.xlu0 %v860, 64
  %v863 = vpop.permute.xlu0 %862
  %v865 = vsel %vm201, %v863, 0
  %867 = vmatprep.subr.bf16.mxu0 0
  %868 = vmatpush1.bf16.msra.mxu0 %v197
  %869 = vmatprep.subr.bf16.mxu0 0
  %870 = vmatpush1.bf16.msra.mxu0 %v198
  %871 = vmatprep.subr.bf16.mxu0 0
  %872 = vmatpush1.bf16.msra.mxu0 0
  %873 = vmatprep.subr.bf16.mxu0 0
  %874 = vmatpush1.bf16.msra.mxu0 0
  %875 = vmatprep.subr.bf16.mxu0 0
  %876 = vmatpush1.bf16.msra.mxu0 0
  %877 = vmatprep.subr.bf16.mxu0 0
  %878 = vmatpush1.bf16.msra.mxu0 0
  %879 = vmatprep.subr.bf16.mxu0 0
  %880 = vmatpush1.bf16.msra.mxu0 0
  %881 = vmatprep.subr.bf16.mxu0 0
  %882 = vmatpush1.bf16.msra.mxu0 0
  %883 = vmatprep.subr.bf16.mxu0 0
  %884 = vmatpush1.bf16.msra.mxu0 0
  %885 = vmatprep.subr.bf16.mxu0 0
  %886 = vmatpush1.bf16.msra.mxu0 0
  %887 = vmatprep.subr.bf16.mxu0 0
  %888 = vmatpush1.bf16.msra.mxu0 0
  %889 = vmatprep.subr.bf16.mxu0 0
  %890 = vmatpush1.bf16.msra.mxu0 0
  %891 = vmatprep.subr.bf16.mxu0 0
  %892 = vmatpush1.bf16.msra.mxu0 0
  %893 = vmatprep.subr.bf16.mxu0 0
  %894 = vmatpush1.bf16.msra.mxu0 0
  %895 = vmatprep.subr.bf16.mxu0 0
  %896 = vmatpush1.bf16.msra.mxu0 0
  %897 = vmatprep.subr.bf16.mxu0 0
  %898 = vmatpush1.bf16.msra.mxu0 0
  %899 = vmatprep.mubr.bf16.mxu0 0
  %900 = vmatmul.mubr.bf16.gmra.mrb[0].mxu0 %v865
  %v901 = vpop.f32.mrb[0].mxu0
  %v902 = vadd.f32 0.0, %v901
  %v903 = vpop.f32.mrb[0].mxu0
  %v904 = vpop.f32.mrb[0].mxu0
  %v905 = vpop.f32.mrb[0].mxu0
  %906 = vdwg.mxu0
  %v907 = vadd.f32 %v859, %v902
  %v908 = vxor.u32 %v907, 2147483648
  %v909 = vmul.f32 %v908, 1.442695
  %v910 = vpow.pop %v909
  %v911 = vadd.f32 %v910, 1.0
  %v912 = vrcp.pop %v911
  %v913 = vmul.f32 1.0, %v912
  %v914 = vtanh.pop %v907
  %v915 = vmul.f32 %v913, %v817
  %917 = vrot.lane.b32.xlu0 %v914, 32
  %v918 = vpop.permute.xlu0 %917
  %v920 = vmul.f32 %v913, %v918
  %922 = vrot.lane.b32.xlu0 %v920, 32
  %v923 = vpop.permute.xlu0 %922
  %v925 = vadd.f32 %v915, %v923
  %v926 = vtanh.pop %v925
  %928 = vrot.lane.b32.xlu0 %v926, 32
  %v929 = vpop.permute.xlu0 %928
  %v931 = vmul.f32 %v913, %v929
  %vm932 = vcmp.gt.s32.totalorder %v186, 6
  %v933 = vsel %vm932, 1, 0
  %v934 = vcvt.s32.f32 %v933
  %936 = vset.pattern.permute.xlu0 0
  %937 = vperm.xlu0 %936, %v934
  %v938 = vpop.permute.xlu0 %937
  %v940 = vmul.f32 %v931, %v938
  %v941 = vmul.f32 %v940, %v285
  %943 = vrot.lane.b32.xlu0 %v941, 64
  %v944 = vpop.permute.xlu0 %943
  %v946 = vsel %vm201, %v944, 0.0
  %947 = vadd.xlane.f32.xlu0 %v946
  %v948 = vpop.xlane.xlu0 %947
  %v949 = vadd.f32 %v948, %v299
  %v950 = vtanh.pop %v949
  %v951 = vmul.f32 %v950, 1.442695
  %v952 = vpow.pop %v951
  %p953 = scmp.gt.s32.totalorder %s187, 6
  %s954 = scalar_select %p953, 1, 0
  %s955 = scvt.s32.f32 %s954
  %v956 = vstv %s955
  %v957 = vmul.f32 %v952, %v956
  %v958 = vadd.f32 %v850, %v957
  %960 = vset.pattern.permute.xlu0 0
  %961 = vperm.xlu0 %960, %v957
  %v962 = vpop.permute.xlu0 %961
  %v964 = vmul.f32 %v962, %v940
  %v965 = vadd.f32 %v857, %v964
  %s966 = scalar_lea.vmem [#allocation2], 56
  %v967 = vld [vmem:[%s966] sm:$0xff]
  %v968 = vpack.c.bf16 %v931, %v931
  %970 = vrot.lane.b32.xlu0 %v968, 64
  %v971 = vpop.permute.xlu0 %970
  %v973 = vsel %vm201, %v971, 0
  %975 = vmatprep.subr.bf16.mxu0 0
  %976 = vmatpush1.bf16.msra.mxu0 %v197
  %977 = vmatprep.subr.bf16.mxu0 0
  %978 = vmatpush1.bf16.msra.mxu0 %v198
  %979 = vmatprep.subr.bf16.mxu0 0
  %980 = vmatpush1.bf16.msra.mxu0 0
  %981 = vmatprep.subr.bf16.mxu0 0
  %982 = vmatpush1.bf16.msra.mxu0 0
  %983 = vmatprep.subr.bf16.mxu0 0
  %984 = vmatpush1.bf16.msra.mxu0 0
  %985 = vmatprep.subr.bf16.mxu0 0
  %986 = vmatpush1.bf16.msra.mxu0 0
  %987 = vmatprep.subr.bf16.mxu0 0
  %988 = vmatpush1.bf16.msra.mxu0 0
  %989 = vmatprep.subr.bf16.mxu0 0
  %990 = vmatpush1.bf16.msra.mxu0 0
  %991 = vmatprep.subr.bf16.mxu0 0
  %992 = vmatpush1.bf16.msra.mxu0 0
  %993 = vmatprep.subr.bf16.mxu0 0
  %994 = vmatpush1.bf16.msra.mxu0 0
  %995 = vmatprep.subr.bf16.mxu0 0
  %996 = vmatpush1.bf16.msra.mxu0 0
  %997 = vmatprep.subr.bf16.mxu0 0
  %998 = vmatpush1.bf16.msra.mxu0 0
  %999 = vmatprep.subr.bf16.mxu0 0
  %1000 = vmatpush1.bf16.msra.mxu0 0
  %1001 = vmatprep.subr.bf16.mxu0 0
  %1002 = vmatpush1.bf16.msra.mxu0 0
  %1003 = vmatprep.subr.bf16.mxu0 0
  %1004 = vmatpush1.bf16.msra.mxu0 0
  %1005 = vmatprep.subr.bf16.mxu0 0
  %1006 = vmatpush1.bf16.msra.mxu0 0
  %1007 = vmatprep.mubr.bf16.mxu0 0
  %1008 = vmatmul.mubr.bf16.gmra.mrb[0].mxu0 %v973
  %v1009 = vpop.f32.mrb[0].mxu0
  %v1010 = vadd.f32 0.0, %v1009
  %v1011 = vpop.f32.mrb[0].mxu0
  %v1012 = vpop.f32.mrb[0].mxu0
  %v1013 = vpop.f32.mrb[0].mxu0
  %1014 = vdwg.mxu0
  %v1015 = vadd.f32 %v967, %v1010
  %v1016 = vxor.u32 %v1015, 2147483648
  %v1017 = vmul.f32 %v1016, 1.442695
  %v1018 = vpow.pop %v1017
  %v1019 = vadd.f32 %v1018, 1.0
  %v1020 = vrcp.pop %v1019
  %v1021 = vmul.f32 1.0, %v1020
  %v1022 = vtanh.pop %v1015
  %v1023 = vmul.f32 %v1021, %v925
  %1025 = vrot.lane.b32.xlu0 %v1022, 32
  %v1026 = vpop.permute.xlu0 %1025
  %v1028 = vmul.f32 %v1021, %v1026
  %1030 = vrot.lane.b32.xlu0 %v1028, 32
  %v1031 = vpop.permute.xlu0 %1030
  %v1033 = vadd.f32 %v1023, %v1031
  %v1034 = vtanh.pop %v1033
  %1036 = vrot.lane.b32.xlu0 %v1034, 32
  %v1037 = vpop.permute.xlu0 %1036
  %v1039 = vmul.f32 %v1021, %v1037
  %vm1040 = vcmp.gt.s32.totalorder %v186, 7
  %v1041 = vsel %vm1040, 1, 0
  %v1042 = vcvt.s32.f32 %v1041
  %1044 = vset.pattern.permute.xlu0 0
  %1045 = vperm.xlu0 %1044, %v1042
  %v1046 = vpop.permute.xlu0 %1045
  %v1048 = vmul.f32 %v1039, %v1046
  %v1049 = vmul.f32 %v1048, %v285
  %1051 = vrot.lane.b32.xlu0 %v1049, 64
  %v1052 = vpop.permute.xlu0 %1051
  %v1054 = vsel %vm201, %v1052, 0.0
  %1055 = vadd.xlane.f32.xlu0 %v1054
  %v1056 = vpop.xlane.xlu0 %1055
  %v1057 = vadd.f32 %v1056, %v299
  %v1058 = vtanh.pop %v1057
  %v1059 = vmul.f32 %v1058, 1.442695
  %v1060 = vpow.pop %v1059
  %p1061 = scmp.gt.s32.totalorder %s187, 7
  %s1062 = scalar_select %p1061, 1, 0
  %s1063 = scvt.s32.f32 %s1062
  %v1064 = vstv %s1063
  %v1065 = vmul.f32 %v1060, %v1064
  %v1066 = vadd.f32 %v958, %v1065
  %1068 = vset.pattern.permute.xlu0 0
  %1069 = vperm.xlu0 %1068, %v1065
  %v1070 = vpop.permute.xlu0 %1069
  %v1072 = vmul.f32 %v1070, %v1048
  %v1073 = vadd.f32 %v965, %v1072
  %v1074 = vrcp.pop %v1066
  %v1075 = vmul.f32 1.0, %v1074
  %1077 = vset.pattern.permute.xlu0 0
  %1078 = vperm.xlu0 %1077, %v1075
  %v1079 = vpop.permute.xlu0 %1078
  %v1081 = vmul.f32 %v1073, %v1079
  %v1082 = vld [vmem:[%s8] sm:$0xff]
  %v1083 = vld [vmem:[%s9] sm:$0x1f]
  %v1084 = vld [vmem:[%s10] sm:$0x1]
  %v1086 = vlaneseq
  %v1087 = vshrl.u32 %v1086, 7
  %v1088 = vsub.s32 0, %v1087
  %v1089 = vrot.slane %v1084, %v1088
  %vm1091 = vcmask 39936
  %v1093 = vsel %vm1091, %v1082, 0
  %vm1095 = vcmask 1044480
  %v1097 = vsel %vm1095, %v1083, 0
  %1099 = vmatprep.subr.mxu0 0.0
  %1100 = vmatpush1.msra.mxu0 %v1097
  %1101 = vmatprep.subr.mxu0 0.0
  %1102 = vmatpush1.msra.mxu0 0.0
  %1103 = vmatprep.subr.mxu0 0.0
  %1104 = vmatpush1.msra.mxu0 0.0
  %1105 = vmatprep.subr.mxu0 0.0
  %1106 = vmatpush1.msra.mxu0 0.0
  %1107 = vmatprep.subr.mxu0 0.0
  %1108 = vmatpush1.msra.mxu0 0.0
  %1109 = vmatprep.subr.mxu0 0.0
  %1110 = vmatpush1.msra.mxu0 0.0
  %1111 = vmatprep.subr.mxu0 0.0
  %1112 = vmatpush1.msra.mxu0 0.0
  %1113 = vmatprep.subr.mxu0 0.0
  %1114 = vmatpush1.msra.mxu0 0.0
  %1115 = vmatprep.subr.mxu0 0.0
  %1116 = vmatpush1.msra.mxu0 0.0
  %1117 = vmatprep.subr.mxu0 0.0
  %1118 = vmatpush1.msra.mxu0 0.0
  %1119 = vmatprep.subr.mxu0 0.0
  %1120 = vmatpush1.msra.mxu0 0.0
  %1121 = vmatprep.subr.mxu0 0.0
  %1122 = vmatpush1.msra.mxu0 0.0
  %1123 = vmatprep.subr.mxu0 0.0
  %1124 = vmatpush1.msra.mxu0 0.0
  %1125 = vmatprep.subr.mxu0 0.0
  %1126 = vmatpush1.msra.mxu0 0.0
  %1127 = vmatprep.subr.mxu0 0.0
  %1128 = vmatpush1.msra.mxu0 0.0
  %1129 = vmatprep.subr.mxu0 0.0
  %1130 = vmatpush1.msra.mxu0 0.0
  %1131 = vmatprep.subr.mxu0 0.0
  %1132 = vmatpush1.msra.mxu0 0.0
  %1133 = vmatprep.subr.mxu0 0.0
  %1134 = vmatpush1.msra.mxu0 0.0
  %1135 = vmatprep.subr.mxu0 0.0
  %1136 = vmatpush1.msra.mxu0 0.0
  %1137 = vmatprep.subr.mxu0 0.0
  %1138 = vmatpush1.msra.mxu0 0.0
  %1139 = vmatprep.subr.mxu0 0.0
  %1140 = vmatpush1.msra.mxu0 0.0
  %1141 = vmatprep.subr.mxu0 0.0
  %1142 = vmatpush1.msra.mxu0 0.0
  %1143 = vmatprep.subr.mxu0 0.0
  %1144 = vmatpush1.msra.mxu0 0.0
  %1145 = vmatprep.subr.mxu0 0.0
  %1146 = vmatpush1.msra.mxu0 0.0
  %1147 = vmatprep.subr.mxu0 0.0
  %1148 = vmatpush1.msra.mxu0 0.0
  %1149 = vmatprep.subr.mxu0 0.0
  %1150 = vmatpush1.msra.mxu0 0.0
  %1151 = vmatprep.subr.mxu0 0.0
  %1152 = vmatpush1.msra.mxu0 0.0
  %1153 = vmatprep.subr.mxu0 0.0
  %1154 = vmatpush1.msra.mxu0 0.0
  %1155 = vmatprep.subr.mxu0 0.0
  %1156 = vmatpush1.msra.mxu0 0.0
  %1157 = vmatprep.subr.mxu0 0.0
  %1158 = vmatpush1.msra.mxu0 0.0
  %1159 = vmatprep.subr.mxu0 0.0
  %1160 = vmatpush1.msra.mxu0 0.0
  %1161 = vmatprep.subr.mxu0 0.0
  %1162 = vmatpush1.msra.mxu0 0.0
  %1163 = vmatprep.mubr.f32.mxu0 0.0
  %1164 = vmatmul.mubr.f32.gmra.mrb[0].mxu0 %v1093
  %v1165 = vpop.f32.mrb[0].mxu0
  %v1166 = vadd.f32 %v1089, %v1165
  %v1167 = vpop.f32.mrb[0].mxu0
  %1168 = vdwg.mxu0
  %v1169 = vmax.f32 %v1166, 0.0
  %v1170 = vld [vmem:[%s11] sm:$0xff]
  %v1171 = vld [vmem:[%s11 + $0x8] sm:$0xff]
  %v1172 = vld [vmem:[%s11 + $0x10] sm:$0xff]
  %v1173 = vld [vmem:[%s11 + $0x18] sm:$0xff]
  %v1174 = vld [vmem:[%s11 + $0x20] sm:$0xff]
  %v1175 = vld [vmem:[%s11 + $0x28] sm:$0xff]
  %v1176 = vld [vmem:[%s11 + $0x30] sm:$0xff]
  %v1177 = vld [vmem:[%s11 + $0x38] sm:$0xff]
  %v1179 = vsel %vm201, %v1169, 0
  %1181 = vmatprep.subr.mxu0 0.0
  %1182 = vmatpush1.msra.mxu0 %v1174
  %1183 = vmatprep.subr.mxu0 0.0
  %1184 = vmatpush1.msra.mxu0 %v1175
  %1185 = vmatprep.subr.mxu0 0.0
  %1186 = vmatpush1.msra.mxu0 %v1176
  %1187 = vmatprep.subr.mxu0 0.0
  %1188 = vmatpush1.msra.mxu0 %v1177
  %1189 = vmatprep.subr.mxu0 0.0
  %1190 = vmatpush1.msra.mxu0 0.0
  %1191 = vmatprep.subr.mxu0 0.0
  %1192 = vmatpush1.msra.mxu0 0.0
  %1193 = vmatprep.subr.mxu0 0.0
  %1194 = vmatpush1.msra.mxu0 0.0
  %1195 = vmatprep.subr.mxu0 0.0
  %1196 = vmatpush1.msra.mxu0 0.0
  %1197 = vmatprep.subr.mxu0 0.0
  %1198 = vmatpush1.msra.mxu0 0.0
  %1199 = vmatprep.subr.mxu0 0.0
  %1200 = vmatpush1.msra.mxu0 0.0
  %1201 = vmatprep.subr.mxu0 0.0
  %1202 = vmatpush1.msra.mxu0 0.0
  %1203 = vmatprep.subr.mxu0 0.0
  %1204 = vmatpush1.msra.mxu0 0.0
  %1205 = vmatprep.subr.mxu0 0.0
  %1206 = vmatpush1.msra.mxu0 0.0
  %1207 = vmatprep.subr.mxu0 0.0
  %1208 = vmatpush1.msra.mxu0 0.0
  %1209 = vmatprep.subr.mxu0 0.0
  %1210 = vmatpush1.msra.mxu0 0.0
  %1211 = vmatprep.subr.mxu0 0.0
  %1212 = vmatpush1.msra.mxu0 0.0
  %1213 = vmatprep.subr.mxu0 0.0
  %1214 = vmatpush1.msra.mxu0 0.0
  %1215 = vmatprep.subr.mxu0 0.0
  %1216 = vmatpush1.msra.mxu0 0.0
  %1217 = vmatprep.subr.mxu0 0.0
  %1218 = vmatpush1.msra.mxu0 0.0
  %1219 = vmatprep.subr.mxu0 0.0
  %1220 = vmatpush1.msra.mxu0 0.0
  %1221 = vmatprep.subr.mxu0 0.0
  %1222 = vmatpush1.msra.mxu0 0.0
  %1223 = vmatprep.subr.mxu0 0.0
  %1224 = vmatpush1.msra.mxu0 0.0
  %1225 = vmatprep.subr.mxu0 0.0
  %1226 = vmatpush1.msra.mxu0 0.0
  %1227 = vmatprep.subr.mxu0 0.0
  %1228 = vmatpush1.msra.mxu0 0.0
  %1229 = vmatprep.subr.mxu0 0.0
  %1230 = vmatpush1.msra.mxu0 0.0
  %1231 = vmatprep.subr.mxu0 0.0
  %1232 = vmatpush1.msra.mxu0 0.0
  %1233 = vmatprep.subr.mxu0 0.0
  %1234 = vmatpush1.msra.mxu0 0.0
  %1235 = vmatprep.subr.mxu0 0.0
  %1236 = vmatpush1.msra.mxu0 0.0
  %1237 = vmatprep.subr.mxu0 0.0
  %1238 = vmatpush1.msra.mxu0 0.0
  %1239 = vmatprep.subr.mxu0 0.0
  %1240 = vmatpush1.msra.mxu0 0.0
  %1241 = vmatprep.subr.mxu0 0.0
  %1242 = vmatpush1.msra.mxu0 0.0
  %1243 = vmatprep.subr.mxu0 0.0
  %1244 = vmatpush1.msra.mxu0 0.0
  %1245 = vmatprep.mubr.f32.mxu0 0.0
  %1246 = vmatmul.mubr.f32.gmra.mrb[0].mxu0 %v1179
  %v1247 = vpop.f32.mrb[0].mxu0
  %v1248 = vadd.f32 0.0, %v1247
  %v1249 = vpop.f32.mrb[0].mxu0
  %1250 = vdwg.mxu0
  %1252 = vrot.lane.b32.xlu0 %v1081, 64
  %v1253 = vpop.permute.xlu0 %1252
  %v1254 = vsel %vm201, %v1253, 0
  %1256 = vmatprep.subr.mxu0 0.0
  %1257 = vmatpush1.msra.mxu0 %v1170
  %1258 = vmatprep.subr.mxu0 0.0
  %1259 = vmatpush1.msra.mxu0 %v1171
  %1260 = vmatprep.subr.mxu0 0.0
  %1261 = vmatpush1.msra.mxu0 %v1172
  %1262 = vmatprep.subr.mxu0 0.0
  %1263 = vmatpush1.msra.mxu0 %v1173
  %1264 = vmatprep.subr.mxu0 0.0
  %1265 = vmatpush1.msra.mxu0 0.0
  %1266 = vmatprep.subr.mxu0 0.0
  %1267 = vmatpush1.msra.mxu0 0.0
  %1268 = vmatprep.subr.mxu0 0.0
  %1269 = vmatpush1.msra.mxu0 0.0
  %1270 = vmatprep.subr.mxu0 0.0
  %1271 = vmatpush1.msra.mxu0 0.0
  %1272 = vmatprep.subr.mxu0 0.0
  %1273 = vmatpush1.msra.mxu0 0.0
  %1274 = vmatprep.subr.mxu0 0.0
  %1275 = vmatpush1.msra.mxu0 0.0
  %1276 = vmatprep.subr.mxu0 0.0
  %1277 = vmatpush1.msra.mxu0 0.0
  %1278 = vmatprep.subr.mxu0 0.0
  %1279 = vmatpush1.msra.mxu0 0.0
  %1280 = vmatprep.subr.mxu0 0.0
  %1281 = vmatpush1.msra.mxu0 0.0
  %1282 = vmatprep.subr.mxu0 0.0
  %1283 = vmatpush1.msra.mxu0 0.0
  %1284 = vmatprep.subr.mxu0 0.0
  %1285 = vmatpush1.msra.mxu0 0.0
  %1286 = vmatprep.subr.mxu0 0.0
  %1287 = vmatpush1.msra.mxu0 0.0
  %1288 = vmatprep.subr.mxu0 0.0
  %1289 = vmatpush1.msra.mxu0 0.0
  %1290 = vmatprep.subr.mxu0 0.0
  %1291 = vmatpush1.msra.mxu0 0.0
  %1292 = vmatprep.subr.mxu0 0.0
  %1293 = vmatpush1.msra.mxu0 0.0
  %1294 = vmatprep.subr.mxu0 0.0
  %1295 = vmatpush1.msra.mxu0 0.0
  %1296 = vmatprep.subr.mxu0 0.0
  %1297 = vmatpush1.msra.mxu0 0.0
  %1298 = vmatprep.subr.mxu0 0.0
  %1299 = vmatpush1.msra.mxu0 0.0
  %1300 = vmatprep.subr.mxu0 0.0
  %1301 = vmatpush1.msra.mxu0 0.0
  %1302 = vmatprep.subr.mxu0 0.0
  %1303 = vmatpush1.msra.mxu0 0.0
  %1304 = vmatprep.subr.mxu0 0.0
  %1305 = vmatpush1.msra.mxu0 0.0
  %1306 = vmatprep.subr.mxu0 0.0
  %1307 = vmatpush1.msra.mxu0 0.0
  %1308 = vmatprep.subr.mxu0 0.0
  %1309 = vmatpush1.msra.mxu0 0.0
  %1310 = vmatprep.subr.mxu0 0.0
  %1311 = vmatpush1.msra.mxu0 0.0
  %1312 = vmatprep.subr.mxu0 0.0
  %1313 = vmatpush1.msra.mxu0 0.0
  %1314 = vmatprep.subr.mxu0 0.0
  %1315 = vmatpush1.msra.mxu0 0.0
  %1316 = vmatprep.subr.mxu0 0.0
  %1317 = vmatpush1.msra.mxu0 0.0
  %1318 = vmatprep.subr.mxu0 0.0
  %1319 = vmatpush1.msra.mxu0 0.0
  %1320 = vmatprep.mubr.f32.mxu0 0.0
  %1321 = vmatmul.mubr.f32.gmra.mrb[0].mxu0 %v1254
  %v1322 = vpop.f32.mrb[0].mxu0
  %v1323 = vadd.f32 %v1248, %v1322
  %v1324 = vpop.f32.mrb[0].mxu0
  %1325 = vdwg.mxu0
  %v1326 = vld [vmem:[%s12] sm:$0x1]
  %v1328 = vlaneseq
  %v1329 = vshrl.u32 %v1328, 7
  %v1330 = vsub.s32 0, %v1329
  %v1331 = vrot.slane %v1326, %v1330
  %v1333 = vadd.f32 %v1323, %v1331
  %v1334 = vmax.f32 %v1333, 0.0
  %v1335 = vld [vmem:[%s13] sm:$0x1]
  %v1336 = vld [vmem:[#allocation6] sm:$0x1]
  %1338 = vset.pattern.permute.xlu0 0
  %1339 = vperm.xlu0 %1338, %v1336
  %v1340 = vpop.permute.xlu0 %1339
  %v1342 = vlaneseq
  %v1343 = vshrl.u32 %v1342, 7
  %v1344 = vsub.s32 0, %v1343
  %v1345 = vrot.slane %v1340, %v1344
  %v1347 = vsel %vm201, %v1335, 0
  %v1350 = vsel %vm201, %v1334, 0
  %1352 = vmatprep.subr.mxu0 0.0
  %1353 = vmatpush1.xpose.msra.mxu0 %v1350
  %1354 = vmatprep.subr.mxu0 0.0
  %1355 = vmatpush1.xpose.msra.mxu0 0.0
  %1356 = vmatprep.subr.mxu0 0.0
  %1357 = vmatpush1.xpose.msra.mxu0 0.0
  %1358 = vmatprep.subr.mxu0 0.0
  %1359 = vmatpush1.xpose.msra.mxu0 0.0
  %1360 = vmatprep.subr.mxu0 0.0
  %1361 = vmatpush1.xpose.msra.mxu0 0.0
  %1362 = vmatprep.subr.mxu0 0.0
  %1363 = vmatpush1.xpose.msra.mxu0 0.0
  %1364 = vmatprep.subr.mxu0 0.0
  %1365 = vmatpush1.xpose.msra.mxu0 0.0
  %1366 = vmatprep.subr.mxu0 0.0
  %1367 = vmatpush1.xpose.msra.mxu0 0.0
  %1368 = vmatprep.subr.mxu0 0.0
  %1369 = vmatpush1.xpose.msra.mxu0 0.0
  %1370 = vmatprep.subr.mxu0 0.0
  %1371 = vmatpush1.xpose.msra.mxu0 0.0
  %1372 = vmatprep.subr.mxu0 0.0
  %1373 = vmatpush1.xpose.msra.mxu0 0.0
  %1374 = vmatprep.subr.mxu0 0.0
  %1375 = vmatpush1.xpose.msra.mxu0 0.0
  %1376 = vmatprep.subr.mxu0 0.0
  %1377 = vmatpush1.xpose.msra.mxu0 0.0
  %1378 = vmatprep.subr.mxu0 0.0
  %1379 = vmatpush1.xpose.msra.mxu0 0.0
  %1380 = vmatprep.subr.mxu0 0.0
  %1381 = vmatpush1.xpose.msra.mxu0 0.0
  %1382 = vmatprep.subr.mxu0 0.0
  %1383 = vmatpush1.xpose.msra.mxu0 0.0
  %1384 = vmatprep.subr.mxu0 0.0
  %1385 = vmatpush1.xpose.msra.mxu0 0.0
  %1386 = vmatprep.subr.mxu0 0.0
  %1387 = vmatpush1.xpose.msra.mxu0 0.0
  %1388 = vmatprep.subr.mxu0 0.0
  %1389 = vmatpush1.xpose.msra.mxu0 0.0
  %1390 = vmatprep.subr.mxu0 0.0
  %1391 = vmatpush1.xpose.msra.mxu0 0.0
  %1392 = vmatprep.subr.mxu0 0.0
  %1393 = vmatpush1.xpose.msra.mxu0 0.0
  %1394 = vmatprep.subr.mxu0 0.0
  %1395 = vmatpush1.xpose.msra.mxu0 0.0
  %1396 = vmatprep.subr.mxu0 0.0
  %1397 = vmatpush1.xpose.msra.mxu0 0.0
  %1398 = vmatprep.subr.mxu0 0.0
  %1399 = vmatpush1.xpose.msra.mxu0 0.0
  %1400 = vmatprep.subr.mxu0 0.0
  %1401 = vmatpush1.xpose.msra.mxu0 0.0
  %1402 = vmatprep.subr.mxu0 0.0
  %1403 = vmatpush1.xpose.msra.mxu0 0.0
  %1404 = vmatprep.subr.mxu0 0.0
  %1405 = vmatpush1.xpose.msra.mxu0 0.0
  %1406 = vmatprep.subr.mxu0 0.0
  %1407 = vmatpush1.xpose.msra.mxu0 0.0
  %1408 = vmatprep.subr.mxu0 0.0
  %1409 = vmatpush1.xpose.msra.mxu0 0.0
  %1410 = vmatprep.subr.mxu0 0.0
  %1411 = vmatpush1.xpose.msra.mxu0 0.0
  %1412 = vmatprep.subr.mxu0 0.0
  %1413 = vmatpush1.xpose.msra.mxu0 0.0
  %1414 = vmatprep.subr.mxu0 0.0
  %1415 = vmatpush1.xpose.msra.mxu0 0.0
  %1416 = vmatprep.mubr.f32.mxu0 0.0
  %1417 = vmatmul.mubr.f32.gmra.mrb[0].mxu0 %v1347
  %v1418 = vpop.f32.mrb[0].mxu0
  %v1419 = vadd.f32 %v1345, %v1418
  %v1420 = vpop.f32.mrb[0].mxu0
  %1421 = vdwg.mxu0
  %vm1422 = vcmask 57344
  %1423 = vst.msk [vmem:[%s15] sm:$0x1] %vm1422, %v1419
  // Predicated region
  $region58: #{embolism_forward.1} parent=0 // pred_check
    _
  $region59: #{embolism_forward.1} parent=0 // pred_check_branch
    %1425 = sbr.rel (0) target = $region61
  $region60: #{embolism_forward.1} parent=0 // pred_region
    _
  $region61: #{embolism_forward.1} parent=0 // pred_fallthru
    _
  // Predicated region
  $region62: #{embolism_forward.1} parent=0 // pred_check
    _
  $region63: #{embolism_forward.1} parent=0 // pred_check_branch
    %1427 = sbr.rel (0) target = $region65
  $region64: #{embolism_forward.1} parent=0 // pred_region
    _
  $region65: #{embolism_forward.1} parent=0 // pred_fallthru
    _

</llo_original>
